<compile_context>
chip_gen: v7x
topology: tpu7x:2x2x1
jax: 0.10.0
libtpu: 0.0.40
codegen_flags: <defaults>
</compile_context>

<pallas_src>
import functools

import jax
import jax.numpy as jnp
from jax.experimental import pallas as pl
from jax.experimental.pallas import tpu as pltpu

NUM_LAYERS = 5  # DenseSAGEConv layers in the encoder


# ----------------------------------------------------------------------------
# Pallas kernel: 5x DenseSAGEConv (+ReLU between) + sum over nodes
# ----------------------------------------------------------------------------
def sage_encoder_kernel(a_ref, x_ref, w_ref, b_ref, o_ref, a_blk,
                        *, matmul_dtype, fold_deg):
    # a_ref : (TB, M, M) f32   augmented adjacency for TB batch elements
    # x_ref : (TB, M, D) f32   node embeddings (incl. cls token)
    # w_ref : (L, 2D, D) f32   fused weights: rows [0:D]=W_rel^T, [D:2D]=W_root^T
    # b_ref : (L, D)     f32   per-layer bias (DenseSAGEConv's lin_root bias)
    # o_ref : (1, TB, D) f32   per-graph sum over nodes (cls_output)
    # a_blk : (TB*M, TB*M) f32 VMEM scratch, block-diagonal adjacency
    TB, M, _ = a_ref.shape
    D = x_ref.shape[-1]

    # ---- once per grid step: degree normalization + block-diagonal A --------
    a = a_ref[...]                                              # (TB, M, M) f32
    deg = jnp.maximum(jnp.sum(a, axis=-1, keepdims=True), 1.0)  # clamp(min=1)
    inv_deg = 1.0 / deg                                         # exact (parity)
    if fold_deg:
        # (A * 1/deg) @ x == (A @ x) / deg ; cheaper when M < ~5*D
        a = a * inv_deg

    # Zero every step (scratch is persistent; zeroing each step is also safe
    # under megacore grid partitioning), then write the TB diagonal blocks with
    # static slice stores.
    a_blk[...] = jnp.zeros_like(a_blk)
    for t in range(TB):
        a_blk[t * M:(t + 1) * M, t * M:(t + 1) * M] = a[t]

    # Cast once per step (not per layer); reused for all 5 aggregations.
    a_mm = a_blk[...].astype(matmul_dtype)                      # (TB*M, TB*M)
    if not fold_deg:
        inv_deg2d = inv_deg.reshape(TB * M, 1)                  # (TB*M, 1) f32

    # Flatten x once; the whole layer loop stays 2-D (no per-layer relayouts).
    x2d = x_ref[...].reshape(TB * M, D)                         # (TB*M, D) f32

    for l in range(NUM_LAYERS):
        x_mm = x2d.astype(matmul_dtype)
        # Neighborhood aggregation: single block-diagonal MXU matmul.
        agg = jnp.dot(a_mm, x_mm, preferred_element_type=jnp.float32)
        if not fold_deg:
            agg = agg * inv_deg2d

        # rel/root projections: two accumulating dots (no concat/reshape).
        w_l = w_ref[l]                                          # (2D, D) f32
        h = (jnp.dot(agg.astype(matmul_dtype), w_l[:D].astype(matmul_dtype),
                     preferred_element_type=jnp.float32)
             + jnp.dot(x_mm, w_l[D:].astype(matmul_dtype),
                       preferred_element_type=jnp.float32)
             + b_ref[l:l + 1, :])
        x2d = jnp.maximum(h, 0.0) if l < NUM_LAYERS - 1 else h

    # cls_output = output.sum(dim=-2)
    # NOTE: D=32 < 128 lanes -> masked store; low priority at these sizes.
    o_ref[0] = jnp.sum(x2d.reshape(TB, M, D), axis=1)           # (TB, D)


# ----------------------------------------------------------------------------
# Generation-aware tiling helpers
# ----------------------------------------------------------------------------
def _device_kind():
    try:
        return jax.devices()[0].device_kind.lower()
    except Exception:
        return ""


def _vmem_capacity_bytes(kind):
    try:
        return int(pltpu.get_tpu_info().vmem_capacity_bytes)
    except Exception:
        return (64 << 20) if "v7" in kind else (128 << 20)


def _num_tensorcores(kind):
    # v7x has 2 TensorCores per chip; v5e/v6e have 1.
    return 2 if "v7" in kind else 1


def _vmem_bytes(block_b, M, D, L, mm_bytes):
    r = block_b * M
    inputs = 2 * block_b * (M * M + M * D) * 4       # double-buffered A / X tiles
    weights = 2 * L * (2 * D * D + D) * 4            # double-buffered weights + bias
    outputs = 2 * block_b * D * 4
    scratch = r * r * 4 + r * r * mm_bytes           # f32 scratch + cast copy
    temps = 6 * r * D * 4                            # x / agg / h layer temporaries
    return inputs + weights + outputs + scratch + temps


def _choose_tiling(B, M, D, L, mm_bytes, budget, num_tc):
    # Fewest steps that feed every TensorCore (steps=1 on single-TC chips, an
    # even count on v7x), growing the step count only if the per-step VMEM
    # estimate would exceed the budget.
    base = num_tc if (num_tc > 1 and B > 1) else 1
    steps = base
    while True:
        block_b = -(-B // steps)                     # ceil-div
        if block_b == 1 or _vmem_bytes(block_b, M, D, L, mm_bytes) <= budget:
            return steps, block_b
        steps += base


# ----------------------------------------------------------------------------
# Wrapper around pallas_call
# ----------------------------------------------------------------------------
def sage_encoder(a_aug, x_emb, w_cat, bias, *, matmul_dtype=jnp.bfloat16):
    B, M, _ = a_aug.shape
    D = x_emb.shape[-1]
    L = w_cat.shape[0]

    kind = _device_kind()
    num_tc = _num_tensorcores(kind)
    vmem_cap = _vmem_capacity_bytes(kind)
    mm_bytes = jnp.dtype(matmul_dtype).itemsize

    steps, block_b = _choose_tiling(B, M, D, L, mm_bytes, vmem_cap // 3, num_tc)
    padded_b = steps * block_b
    if padded_b != B:
        # Pad with empty graphs (zero adjacency -> deg clamps to 1, no NaNs);
        # padded rows are sliced off below.
        pad = padded_b - B
        a_aug = jnp.concatenate(
            [a_aug, jnp.zeros((pad, M, M), a_aug.dtype)], axis=0)
        x_emb = jnp.concatenate(
            [x_emb, jnp.zeros((pad, M, D), x_emb.dtype)], axis=0)

    est = _vmem_bytes(block_b, M, D, L, mm_bytes)
    vmem_limit = int(min(int(vmem_cap * 0.9), max(2 * est + (4 << 20), 32 << 20)))

    fold_deg = M < 5 * D  # fold 1/deg into A only while A is the smaller rewrite
    kernel = functools.partial(sage_encoder_kernel,
                               matmul_dtype=matmul_dtype, fold_deg=fold_deg)

    # NOTE: the constant weight/bias inputs could be single-buffered
    # (pipeline_mode=pl.Buffered(1)); skipped — ~80 KiB, kept maximally portable.
    out = pl.pallas_call(
        kernel,
        out_shape=jax.ShapeDtypeStruct((steps, block_b, D), jnp.float32),
        grid=(steps,),
        in_specs=[
            pl.BlockSpec((block_b, M, M), lambda b: (b, 0, 0)),
            pl.BlockSpec((block_b, M, D), lambda b: (b, 0, 0)),
            pl.BlockSpec((L, 2 * D, D), lambda b: (0, 0, 0)),
            pl.BlockSpec((L, D), lambda b: (0, 0)),
        ],
        out_specs=pl.BlockSpec((1, block_b, D), lambda b: (b, 0, 0)),
        scratch_shapes=[pltpu.VMEM((block_b * M, block_b * M), jnp.float32)],
        compiler_params=pltpu.CompilerParams(
            dimension_semantics=("parallel",),
            vmem_limit_bytes=vmem_limit),
    )(a_aug, x_emb, w_cat, bias)
    return out.reshape(padded_b, D)[:B]


# ----------------------------------------------------------------------------
# Plain-JAX glue: positional encoding (Laplacian eigendecomposition)
# ----------------------------------------------------------------------------
def positional_encoding(A, pos_enc_dim=8):
    # normalized Laplacian L = I - D^-1/2 A D^-1/2
    d = jnp.sum(A, axis=-1)
    # Guard zero-degree nodes (the reference produces inf there; identical for
    # graphs with self-loops, which is the supported input regime).
    d_inv_sqrt = jnp.where(d > 0, d ** (-0.5), 0.0)
    DAD = jnp.einsum('bi,bij,bj->bij', d_inv_sqrt, A, d_inv_sqrt)
    N = A.shape[-1]
    L = jnp.eye(N, dtype=A.dtype)[None] - DAD

    # TODO(synk): torch.linalg.eig (general, complex) has no TPU/Pallas
    # equivalent; L is symmetric for symmetric A, so use eigh here.
    eigval, eigvec = jnp.linalg.eigh(L)

    sorted_idx = jnp.argsort(eigval, axis=-1)
    sorted_val = jnp.take_along_axis(eigval, sorted_idx, axis=-1)
    # Faithful reproduction of the reference's gather: the index is expanded
    # along the LAST dim, so every column j gets EigVec[b, i, sorted_idx[b, i]]
    # (intentional — matches torch.gather with .unsqueeze(-1).expand(...)).
    gathered = jnp.take_along_axis(eigvec, sorted_idx[..., None], axis=-1)  # (B,N,1)
    sorted_vec = jnp.broadcast_to(gathered, eigvec.shape)                    # (B,N,N)

    return (sorted_vec[:, :, 1:pos_enc_dim + 1].astype(jnp.float32),
            sorted_val[:, 1:pos_enc_dim + 1].astype(jnp.float32))


# ----------------------------------------------------------------------------
# Parameters (deterministic synthetic init; shapes from GCN.__init__)
# ----------------------------------------------------------------------------
def init_params(key, num_states, d_model, eigen_positions):
    half = d_model // 2
    ks = jax.random.split(key, 6 + 2 * NUM_LAYERS)

    def lin(k, fan_in, fan_out):
        return (jax.random.normal(k, (fan_in, fan_out), jnp.float32)
                / jnp.sqrt(jnp.float32(fan_in)))

    p = {}
    p['emb'] = jax.random.normal(ks[0], (num_states + 1, half), jnp.float32) * 0.1
    # cls_encoding_embedder: Linear(eig, d_model) -> ReLU -> Linear(d_model, half)
    p['cls_w1'] = lin(ks[1], eigen_positions, d_model)
    p['cls_b1'] = jnp.zeros((d_model,), jnp.float32)
    p['cls_w2'] = lin(ks[2], d_model, half)
    p['cls_b2'] = jnp.zeros((half,), jnp.float32)
    # position_encoding_embedder: Linear(eig, half)
    p['pos_w'] = lin(ks[3], eigen_positions, half)
    p['pos_b'] = jnp.zeros((half,), jnp.float32)
    # 5x DenseSAGEConv(d_model, d_model): lin_rel (no bias) + lin_root (+ bias)
    w = jnp.stack([
        jnp.stack([lin(ks[4 + 2 * l], d_model, d_model),        # W_rel^T  (in,out)
                   lin(ks[5 + 2 * l], d_model, d_model)])       # W_root^T (in,out)
        for l in range(NUM_LAYERS)
    ])                                                          # (L, 2, D, D)
    p['sage_w'] = w
    p['sage_b'] = jnp.zeros((NUM_LAYERS, d_model), jnp.float32)
    return p


# ----------------------------------------------------------------------------
# Forward pass (mirrors GCN.forward)
# ----------------------------------------------------------------------------
def gcn_forward(params, A, x, *, d_model, eigen_positions,
                matmul_dtype=jnp.bfloat16):
    B, N, _ = A.shape

    embeddings = params['emb'][x]                                    # (B, N, half)
    eigvec, eigval = positional_encoding(A, eigen_positions)         # (B,N,8), (B,8)

    eigvec_emb = eigvec @ params['pos_w'] + params['pos_b']          # (B, N, half)
    h = jnp.maximum(eigval @ params['cls_w1'] + params['cls_b1'], 0.0)
    eigval_emb = h @ params['cls_w2'] + params['cls_b2']             # (B, half)

    embeddings = jnp.concatenate([embeddings, eigvec_emb], axis=-1)  # (B, N, D)
    cls_emb = jnp.broadcast_to(params['emb'][-1][None, None, :],
                               (B, 1, params['emb'].shape[-1]))
    cls_token = jnp.concatenate([cls_emb, eigval_emb[:, None, :]], axis=-1)
    embeddings = jnp.concatenate([embeddings, cls_token], axis=1)    # (B, N+1, D)

    ones_col = jnp.ones((B, N, 1), A.dtype)
    ones_row = jnp.ones((B, 1, N + 1), A.dtype)
    A_aug = jnp.concatenate([A, ones_col], axis=-1)
    A_aug = jnp.concatenate([A_aug, ones_row], axis=1)               # (B, N+1, N+1)

    # Fuse the rel/root weights into a single (L, 2D, D) tensor: rows [0:D]
    # multiply the aggregated features, rows [D:2D] the raw features (the
    # kernel slices them back out and issues two accumulating dots).
    D = d_model
    w_cat = params['sage_w'].reshape(NUM_LAYERS, 2 * D, D)

    return sage_encoder(A_aug.astype(jnp.float32),
                        embeddings.astype(jnp.float32),
                        w_cat, params['sage_b'],
                        matmul_dtype=matmul_dtype)                   # (B, D)


# ----------------------------------------------------------------------------
if __name__ == "__main__":
    num_states, d_model, d_out, eigen_positions = 4, 32, 16, 8  # d_out unused in forward
    B, N = 4, 15  # N+1 = 16 nodes after the cls token

    key = jax.random.PRNGKey(0)
    k_a, k_x, k_p = jax.random.split(key, 3)

    # symmetric 0/1 adjacency with self loops (degree >= 1 so deg^-0.5 is finite)
    r = jax.random.uniform(k_a, (B, N, N))
    A = ((r + jnp.swapaxes(r, 1, 2)) > 1.0).astype(jnp.float32)
    A = jnp.maximum(A, jnp.eye(N, dtype=jnp.float32)[None])

    # node states (integer indices into the embedding table)
    x = jax.random.randint(k_x, (B, N), 0, num_states)

    params = init_params(k_p, num_states, d_model, eigen_positions)

    out = gcn_forward(params, A, x, d_model=d_model,
                      eigen_positions=eigen_positions)
    jax.block_until_ready(out)

    assert out.shape == (B, d_model), out.shape
    assert jnp.all(jnp.isfinite(out))
    print("KERNEL_OK")
</pallas_src>

<mosaic_0001>
module attributes {stable_mosaic.version = 11 : i64} {
  func.func @sage_encoder_kernel(%arg0: i32, %arg1: memref<4x16x16xf32, #tpu.memory_space<vmem>>, %arg2: memref<4x16x32xf32, #tpu.memory_space<vmem>>, %arg3: memref<5x64x32xf32, #tpu.memory_space<vmem>>, %arg4: memref<5x32xf32, #tpu.memory_space<vmem>>, %arg5: memref<1x4x32xf32, #tpu.memory_space<vmem>>, %arg6: memref<64x64xf32, #tpu.memory_space<vmem>>) attributes {dimension_semantics = [#tpu.dimension_semantics<parallel>], iteration_bounds = array<i64: 1>, scalar_prefetch = 0 : i64, scratch_operands = 1 : i64, tpu.core_type = #tpu.core_type<tc>, window_params = [{transform_indices = @transform_0, window_bounds = array<i64: 4, 16, 16>}, {transform_indices = @transform_1, window_bounds = array<i64: 4, 16, 32>}, {pipeline_mode = #tpu.pipeline_mode<synchronous>, transform_indices = @transform_2, window_bounds = array<i64: 5, 64, 32>}, {pipeline_mode = #tpu.pipeline_mode<synchronous>, transform_indices = @transform_3, window_bounds = array<i64: 5, 32>}, {transform_indices = @transform_4, window_bounds = array<i64: 1, 4, 32>}]} {
    %c0 = arith.constant 0 : index
    %c0_0 = arith.constant 0 : index
    %c0_1 = arith.constant 0 : index
    %0 = vector.load %arg1[%c0, %c0_0, %c0_1] : memref<4x16x16xf32, #tpu.memory_space<vmem>>, vector<4x16x16xf32>
    %cst = arith.constant dense<0.000000e+00> : vector<4x16xf32>
    %1 = vector.multi_reduction <add>, %0, %cst [2] : vector<4x16x16xf32> to vector<4x16xf32>
    %2 = vector.shape_cast %1 : vector<4x16xf32> to vector<4x16x1xf32>
    %cst_2 = arith.constant 1.000000e+00 : f32
    %3 = vector.broadcast %cst_2 : f32 to vector<4x16x1xf32>
    %4 = arith.maximumf %2, %3 : vector<4x16x1xf32>
    %cst_3 = arith.constant 1.000000e+00 : f32
    %5 = vector.broadcast %cst_3 : f32 to vector<4x16x1xf32>
    %6 = arith.divf %5, %4 : vector<4x16x1xf32>
    %7 = vector.broadcast %6 : vector<4x16x1xf32> to vector<4x16x16xf32>
    %8 = arith.mulf %0, %7 : vector<4x16x16xf32>
    %cst_4 = arith.constant 0.000000e+00 : f32
    %9 = vector.broadcast %cst_4 : f32 to vector<64x64xf32>
    %c0_5 = arith.constant 0 : index
    %c0_6 = arith.constant 0 : index
    %10 = vector.load %arg6[%c0_5, %c0_6] : memref<64x64xf32, #tpu.memory_space<vmem>>, vector<64x64xf32>
    tpu.vector_store %arg6[%c0_5, %c0_6], %9 {strides = array<i32>} : memref<64x64xf32, #tpu.memory_space<vmem>>, vector<64x64xf32>,
    %11 = vector.extract_strided_slice %8 {offsets = [0, 0, 0], sizes = [1, 16, 16], strides = [1, 1, 1]} : vector<4x16x16xf32> to vector<1x16x16xf32>
    %12 = vector.shape_cast %11 : vector<1x16x16xf32> to vector<16x16xf32>
    %c0_7 = arith.constant 0 : index
    %c0_8 = arith.constant 0 : index
    %13 = vector.load %arg6[%c0_7, %c0_8] : memref<64x64xf32, #tpu.memory_space<vmem>>, vector<16x16xf32>
    tpu.vector_store %arg6[%c0_7, %c0_8], %12 {strides = array<i32>} : memref<64x64xf32, #tpu.memory_space<vmem>>, vector<16x16xf32>,
    %14 = vector.extract_strided_slice %8 {offsets = [1, 0, 0], sizes = [1, 16, 16], strides = [1, 1, 1]} : vector<4x16x16xf32> to vector<1x16x16xf32>
    %15 = vector.shape_cast %14 : vector<1x16x16xf32> to vector<16x16xf32>
    %c16 = arith.constant 16 : index
    %c16_9 = arith.constant 16 : index
    %16 = vector.load %arg6[%c16, %c16_9] : memref<64x64xf32, #tpu.memory_space<vmem>>, vector<16x16xf32>
    tpu.vector_store %arg6[%c16, %c16_9], %15 {strides = array<i32>} : memref<64x64xf32, #tpu.memory_space<vmem>>, vector<16x16xf32>,
    %17 = vector.extract_strided_slice %8 {offsets = [2, 0, 0], sizes = [1, 16, 16], strides = [1, 1, 1]} : vector<4x16x16xf32> to vector<1x16x16xf32>
    %18 = vector.shape_cast %17 : vector<1x16x16xf32> to vector<16x16xf32>
    %c32 = arith.constant 32 : index
    %c32_10 = arith.constant 32 : index
    %19 = vector.load %arg6[%c32, %c32_10] : memref<64x64xf32, #tpu.memory_space<vmem>>, vector<16x16xf32>
    tpu.vector_store %arg6[%c32, %c32_10], %18 {strides = array<i32>} : memref<64x64xf32, #tpu.memory_space<vmem>>, vector<16x16xf32>,
    %20 = vector.extract_strided_slice %8 {offsets = [3, 0, 0], sizes = [1, 16, 16], strides = [1, 1, 1]} : vector<4x16x16xf32> to vector<1x16x16xf32>
    %21 = vector.shape_cast %20 : vector<1x16x16xf32> to vector<16x16xf32>
    %c48 = arith.constant 48 : index
    %c48_11 = arith.constant 48 : index
    %22 = vector.load %arg6[%c48, %c48_11] : memref<64x64xf32, #tpu.memory_space<vmem>>, vector<16x16xf32>
    tpu.vector_store %arg6[%c48, %c48_11], %21 {strides = array<i32>} : memref<64x64xf32, #tpu.memory_space<vmem>>, vector<16x16xf32>,
    %c0_12 = arith.constant 0 : index
    %c0_13 = arith.constant 0 : index
    %23 = vector.load %arg6[%c0_12, %c0_13] : memref<64x64xf32, #tpu.memory_space<vmem>>, vector<64x64xf32>
    %24 = arith.truncf %23 : vector<64x64xf32> to vector<64x64xbf16>
    %c0_14 = arith.constant 0 : index
    %c0_15 = arith.constant 0 : index
    %c0_16 = arith.constant 0 : index
    %25 = vector.load %arg2[%c0_14, %c0_15, %c0_16] : memref<4x16x32xf32, #tpu.memory_space<vmem>>, vector<4x16x32xf32>
    %26 = vector.shape_cast %25 : vector<4x16x32xf32> to vector<64x32xf32>
    %27 = arith.truncf %26 : vector<64x32xf32> to vector<64x32xbf16>
    %cst_17 = arith.constant dense<0.000000e+00> : vector<64x32xf32>
    %28 = tpu.matmul %24, %27, %cst_17 {dimension_numbers = #tpu.dot_dimension_numbers<[1], [0], [0], [1], [0, 0, 1, 1], [], []>} : vector<64x64xbf16>, vector<64x32xbf16>, vector<64x32xf32> -> vector<64x32xf32>
    %c0_18 = arith.constant 0 : index
    %c0_19 = arith.constant 0 : index
    %c0_20 = arith.constant 0 : index
    %29 = vector.load %arg3[%c0_18, %c0_19, %c0_20] : memref<5x64x32xf32, #tpu.memory_space<vmem>>, vector<1x64x32xf32>
    %30 = vector.shape_cast %29 : vector<1x64x32xf32> to vector<64x32xf32>
    %31 = arith.truncf %28 : vector<64x32xf32> to vector<64x32xbf16>
    %32 = vector.extract_strided_slice %30 {offsets = [0, 0], sizes = [32, 32], strides = [1, 1]} : vector<64x32xf32> to vector<32x32xf32>
    %33 = arith.truncf %32 : vector<32x32xf32> to vector<32x32xbf16>
    %cst_21 = arith.constant dense<0.000000e+00> : vector<64x32xf32>
    %34 = tpu.matmul %31, %33, %cst_21 {dimension_numbers = #tpu.dot_dimension_numbers<[1], [0], [0], [1], [0, 0, 1, 1], [], []>} : vector<64x32xbf16>, vector<32x32xbf16>, vector<64x32xf32> -> vector<64x32xf32>
    %35 = vector.extract_strided_slice %30 {offsets = [32, 0], sizes = [32, 32], strides = [1, 1]} : vector<64x32xf32> to vector<32x32xf32>
    %36 = arith.truncf %35 : vector<32x32xf32> to vector<32x32xbf16>
    %cst_22 = arith.constant dense<0.000000e+00> : vector<64x32xf32>
    %37 = tpu.matmul %27, %36, %cst_22 {dimension_numbers = #tpu.dot_dimension_numbers<[1], [0], [0], [1], [0, 0, 1, 1], [], []>} : vector<64x32xbf16>, vector<32x32xbf16>, vector<64x32xf32> -> vector<64x32xf32>
    %38 = arith.addf %34, %37 : vector<64x32xf32>
    %c0_23 = arith.constant 0 : index
    %c0_24 = arith.constant 0 : index
    %39 = vector.load %arg4[%c0_23, %c0_24] : memref<5x32xf32, #tpu.memory_space<vmem>>, vector<1x32xf32>
    %40 = vector.broadcast %39 : vector<1x32xf32> to vector<64x32xf32>
    %41 = arith.addf %38, %40 : vector<64x32xf32>
    %cst_25 = arith.constant 0.000000e+00 : f32
    %42 = vector.broadcast %cst_25 : f32 to vector<64x32xf32>
    %43 = arith.maximumf %41, %42 : vector<64x32xf32>
    %44 = arith.truncf %43 : vector<64x32xf32> to vector<64x32xbf16>
    %cst_26 = arith.constant dense<0.000000e+00> : vector<64x32xf32>
    %45 = tpu.matmul %24, %44, %cst_26 {dimension_numbers = #tpu.dot_dimension_numbers<[1], [0], [0], [1], [0, 0, 1, 1], [], []>} : vector<64x64xbf16>, vector<64x32xbf16>, vector<64x32xf32> -> vector<64x32xf32>
    %c1 = arith.constant 1 : index
    %c0_27 = arith.constant 0 : index
    %c0_28 = arith.constant 0 : index
    %46 = vector.load %arg3[%c1, %c0_27, %c0_28] : memref<5x64x32xf32, #tpu.memory_space<vmem>>, vector<1x64x32xf32>
    %47 = vector.shape_cast %46 : vector<1x64x32xf32> to vector<64x32xf32>
    %48 = arith.truncf %45 : vector<64x32xf32> to vector<64x32xbf16>
    %49 = vector.extract_strided_slice %47 {offsets = [0, 0], sizes = [32, 32], strides = [1, 1]} : vector<64x32xf32> to vector<32x32xf32>
    %50 = arith.truncf %49 : vector<32x32xf32> to vector<32x32xbf16>
    %cst_29 = arith.constant dense<0.000000e+00> : vector<64x32xf32>
    %51 = tpu.matmul %48, %50, %cst_29 {dimension_numbers = #tpu.dot_dimension_numbers<[1], [0], [0], [1], [0, 0, 1, 1], [], []>} : vector<64x32xbf16>, vector<32x32xbf16>, vector<64x32xf32> -> vector<64x32xf32>
    %52 = vector.extract_strided_slice %47 {offsets = [32, 0], sizes = [32, 32], strides = [1, 1]} : vector<64x32xf32> to vector<32x32xf32>
    %53 = arith.truncf %52 : vector<32x32xf32> to vector<32x32xbf16>
    %cst_30 = arith.constant dense<0.000000e+00> : vector<64x32xf32>
    %54 = tpu.matmul %44, %53, %cst_30 {dimension_numbers = #tpu.dot_dimension_numbers<[1], [0], [0], [1], [0, 0, 1, 1], [], []>} : vector<64x32xbf16>, vector<32x32xbf16>, vector<64x32xf32> -> vector<64x32xf32>
    %55 = arith.addf %51, %54 : vector<64x32xf32>
    %c1_31 = arith.constant 1 : index
    %c0_32 = arith.constant 0 : index
    %56 = vector.load %arg4[%c1_31, %c0_32] : memref<5x32xf32, #tpu.memory_space<vmem>>, vector<1x32xf32>
    %57 = vector.broadcast %56 : vector<1x32xf32> to vector<64x32xf32>
    %58 = arith.addf %55, %57 : vector<64x32xf32>
    %cst_33 = arith.constant 0.000000e+00 : f32
    %59 = vector.broadcast %cst_33 : f32 to vector<64x32xf32>
    %60 = arith.maximumf %58, %59 : vector<64x32xf32>
    %61 = arith.truncf %60 : vector<64x32xf32> to vector<64x32xbf16>
    %cst_34 = arith.constant dense<0.000000e+00> : vector<64x32xf32>
    %62 = tpu.matmul %24, %61, %cst_34 {dimension_numbers = #tpu.dot_dimension_numbers<[1], [0], [0], [1], [0, 0, 1, 1], [], []>} : vector<64x64xbf16>, vector<64x32xbf16>, vector<64x32xf32> -> vector<64x32xf32>
    %c2 = arith.constant 2 : index
    %c0_35 = arith.constant 0 : index
    %c0_36 = arith.constant 0 : index
    %63 = vector.load %arg3[%c2, %c0_35, %c0_36] : memref<5x64x32xf32, #tpu.memory_space<vmem>>, vector<1x64x32xf32>
    %64 = vector.shape_cast %63 : vector<1x64x32xf32> to vector<64x32xf32>
    %65 = arith.truncf %62 : vector<64x32xf32> to vector<64x32xbf16>
    %66 = vector.extract_strided_slice %64 {offsets = [0, 0], sizes = [32, 32], strides = [1, 1]} : vector<64x32xf32> to vector<32x32xf32>
    %67 = arith.truncf %66 : vector<32x32xf32> to vector<32x32xbf16>
    %cst_37 = arith.constant dense<0.000000e+00> : vector<64x32xf32>
    %68 = tpu.matmul %65, %67, %cst_37 {dimension_numbers = #tpu.dot_dimension_numbers<[1], [0], [0], [1], [0, 0, 1, 1], [], []>} : vector<64x32xbf16>, vector<32x32xbf16>, vector<64x32xf32> -> vector<64x32xf32>
    %69 = vector.extract_strided_slice %64 {offsets = [32, 0], sizes = [32, 32], strides = [1, 1]} : vector<64x32xf32> to vector<32x32xf32>
    %70 = arith.truncf %69 : vector<32x32xf32> to vector<32x32xbf16>
    %cst_38 = arith.constant dense<0.000000e+00> : vector<64x32xf32>
    %71 = tpu.matmul %61, %70, %cst_38 {dimension_numbers = #tpu.dot_dimension_numbers<[1], [0], [0], [1], [0, 0, 1, 1], [], []>} : vector<64x32xbf16>, vector<32x32xbf16>, vector<64x32xf32> -> vector<64x32xf32>
    %72 = arith.addf %68, %71 : vector<64x32xf32>
    %c2_39 = arith.constant 2 : index
    %c0_40 = arith.constant 0 : index
    %73 = vector.load %arg4[%c2_39, %c0_40] : memref<5x32xf32, #tpu.memory_space<vmem>>, vector<1x32xf32>
    %74 = vector.broadcast %73 : vector<1x32xf32> to vector<64x32xf32>
    %75 = arith.addf %72, %74 : vector<64x32xf32>
    %cst_41 = arith.constant 0.000000e+00 : f32
    %76 = vector.broadcast %cst_41 : f32 to vector<64x32xf32>
    %77 = arith.maximumf %75, %76 : vector<64x32xf32>
    %78 = arith.truncf %77 : vector<64x32xf32> to vector<64x32xbf16>
    %cst_42 = arith.constant dense<0.000000e+00> : vector<64x32xf32>
    %79 = tpu.matmul %24, %78, %cst_42 {dimension_numbers = #tpu.dot_dimension_numbers<[1], [0], [0], [1], [0, 0, 1, 1], [], []>} : vector<64x64xbf16>, vector<64x32xbf16>, vector<64x32xf32> -> vector<64x32xf32>
    %c3 = arith.constant 3 : index
    %c0_43 = arith.constant 0 : index
    %c0_44 = arith.constant 0 : index
    %80 = vector.load %arg3[%c3, %c0_43, %c0_44] : memref<5x64x32xf32, #tpu.memory_space<vmem>>, vector<1x64x32xf32>
    %81 = vector.shape_cast %80 : vector<1x64x32xf32> to vector<64x32xf32>
    %82 = arith.truncf %79 : vector<64x32xf32> to vector<64x32xbf16>
    %83 = vector.extract_strided_slice %81 {offsets = [0, 0], sizes = [32, 32], strides = [1, 1]} : vector<64x32xf32> to vector<32x32xf32>
    %84 = arith.truncf %83 : vector<32x32xf32> to vector<32x32xbf16>
    %cst_45 = arith.constant dense<0.000000e+00> : vector<64x32xf32>
    %85 = tpu.matmul %82, %84, %cst_45 {dimension_numbers = #tpu.dot_dimension_numbers<[1], [0], [0], [1], [0, 0, 1, 1], [], []>} : vector<64x32xbf16>, vector<32x32xbf16>, vector<64x32xf32> -> vector<64x32xf32>
    %86 = vector.extract_strided_slice %81 {offsets = [32, 0], sizes = [32, 32], strides = [1, 1]} : vector<64x32xf32> to vector<32x32xf32>
    %87 = arith.truncf %86 : vector<32x32xf32> to vector<32x32xbf16>
    %cst_46 = arith.constant dense<0.000000e+00> : vector<64x32xf32>
    %88 = tpu.matmul %78, %87, %cst_46 {dimension_numbers = #tpu.dot_dimension_numbers<[1], [0], [0], [1], [0, 0, 1, 1], [], []>} : vector<64x32xbf16>, vector<32x32xbf16>, vector<64x32xf32> -> vector<64x32xf32>
    %89 = arith.addf %85, %88 : vector<64x32xf32>
    %c3_47 = arith.constant 3 : index
    %c0_48 = arith.constant 0 : index
    %90 = vector.load %arg4[%c3_47, %c0_48] : memref<5x32xf32, #tpu.memory_space<vmem>>, vector<1x32xf32>
    %91 = vector.broadcast %90 : vector<1x32xf32> to vector<64x32xf32>
    %92 = arith.addf %89, %91 : vector<64x32xf32>
    %cst_49 = arith.constant 0.000000e+00 : f32
    %93 = vector.broadcast %cst_49 : f32 to vector<64x32xf32>
    %94 = arith.maximumf %92, %93 : vector<64x32xf32>
    %95 = arith.truncf %94 : vector<64x32xf32> to vector<64x32xbf16>
    %cst_50 = arith.constant dense<0.000000e+00> : vector<64x32xf32>
    %96 = tpu.matmul %24, %95, %cst_50 {dimension_numbers = #tpu.dot_dimension_numbers<[1], [0], [0], [1], [0, 0, 1, 1], [], []>} : vector<64x64xbf16>, vector<64x32xbf16>, vector<64x32xf32> -> vector<64x32xf32>
    %c4 = arith.constant 4 : index
    %c0_51 = arith.constant 0 : index
    %c0_52 = arith.constant 0 : index
    %97 = vector.load %arg3[%c4, %c0_51, %c0_52] : memref<5x64x32xf32, #tpu.memory_space<vmem>>, vector<1x64x32xf32>
    %98 = vector.shape_cast %97 : vector<1x64x32xf32> to vector<64x32xf32>
    %99 = arith.truncf %96 : vector<64x32xf32> to vector<64x32xbf16>
    %100 = vector.extract_strided_slice %98 {offsets = [0, 0], sizes = [32, 32], strides = [1, 1]} : vector<64x32xf32> to vector<32x32xf32>
    %101 = arith.truncf %100 : vector<32x32xf32> to vector<32x32xbf16>
    %cst_53 = arith.constant dense<0.000000e+00> : vector<64x32xf32>
    %102 = tpu.matmul %99, %101, %cst_53 {dimension_numbers = #tpu.dot_dimension_numbers<[1], [0], [0], [1], [0, 0, 1, 1], [], []>} : vector<64x32xbf16>, vector<32x32xbf16>, vector<64x32xf32> -> vector<64x32xf32>
    %103 = vector.extract_strided_slice %98 {offsets = [32, 0], sizes = [32, 32], strides = [1, 1]} : vector<64x32xf32> to vector<32x32xf32>
    %104 = arith.truncf %103 : vector<32x32xf32> to vector<32x32xbf16>
    %cst_54 = arith.constant dense<0.000000e+00> : vector<64x32xf32>
    %105 = tpu.matmul %95, %104, %cst_54 {dimension_numbers = #tpu.dot_dimension_numbers<[1], [0], [0], [1], [0, 0, 1, 1], [], []>} : vector<64x32xbf16>, vector<32x32xbf16>, vector<64x32xf32> -> vector<64x32xf32>
    %106 = arith.addf %102, %105 : vector<64x32xf32>
    %c4_55 = arith.constant 4 : index
    %c0_56 = arith.constant 0 : index
    %107 = vector.load %arg4[%c4_55, %c0_56] : memref<5x32xf32, #tpu.memory_space<vmem>>, vector<1x32xf32>
    %108 = vector.broadcast %107 : vector<1x32xf32> to vector<64x32xf32>
    %109 = arith.addf %106, %108 : vector<64x32xf32>
    %110 = vector.shape_cast %109 : vector<64x32xf32> to vector<4x16x32xf32>
    %cst_57 = arith.constant dense<0.000000e+00> : vector<4x32xf32>
    %111 = vector.multi_reduction <add>, %110, %cst_57 [1] : vector<4x16x32xf32> to vector<4x32xf32>
    %c0_58 = arith.constant 0 : index
    %c0_59 = arith.constant 0 : index
    %c0_60 = arith.constant 0 : index
    %112 = vector.load %arg5[%c0_58, %c0_59, %c0_60] : memref<1x4x32xf32, #tpu.memory_space<vmem>>, vector<1x4x32xf32>
    %113 = vector.shape_cast %112 : vector<1x4x32xf32> to vector<4x32xf32>
    %114 = vector.shape_cast %111 : vector<4x32xf32> to vector<1x4x32xf32>
    tpu.vector_store %arg5[%c0_58, %c0_59, %c0_60], %114 {strides = array<i32>} : memref<1x4x32xf32, #tpu.memory_space<vmem>>, vector<1x4x32xf32>,
    return
  }
  func.func @transform_0(%arg0: i32) -> (i32, i32, i32) {
    %c0_i32 = arith.constant 0 : i32
    %c0_i32_0 = arith.constant 0 : i32
    %c0_i32_1 = arith.constant 0 : i32
    return %arg0, %c0_i32, %c0_i32_0 : i32, i32, i32
  }
  func.func @transform_1(%arg0: i32) -> (i32, i32, i32) {
    %c0_i32 = arith.constant 0 : i32
    %c0_i32_0 = arith.constant 0 : i32
    %c0_i32_1 = arith.constant 0 : i32
    return %arg0, %c0_i32, %c0_i32_0 : i32, i32, i32
  }
  func.func @transform_2(%arg0: i32) -> (i32, i32, i32) {
    %c0_i32 = arith.constant 0 : i32
    %c0_i32_0 = arith.constant 0 : i32
    %c0_i32_1 = arith.constant 0 : i32
    %c0_i32_2 = arith.constant 0 : i32
    return %c0_i32, %c0_i32_0, %c0_i32_1 : i32, i32, i32
  }
  func.func @transform_3(%arg0: i32) -> (i32, i32) {
    %c0_i32 = arith.constant 0 : i32
    %c0_i32_0 = arith.constant 0 : i32
    %c0_i32_1 = arith.constant 0 : i32
    return %c0_i32, %c0_i32_0 : i32, i32
  }
  func.func @transform_4(%arg0: i32) -> (i32, i32, i32) {
    %c0_i32 = arith.constant 0 : i32
    %c0_i32_0 = arith.constant 0 : i32
    %c0_i32_1 = arith.constant 0 : i32
    return %arg0, %c0_i32, %c0_i32_0 : i32, i32, i32
  }
}

</mosaic_0001>

<llo_original>
// kernel: tpu_custom_call.1
$region0: #{tpu_custom_call.1}
  #allocation0 [shape = 'u32[]', space=smem, size = 0x4, offset = 0x4, fixed_abs, tag = 'smem constant byte address 0x4 - core index']
  #allocation1 [shape = 'u32[144,128]{1,0:T(1,128)}', space=vmem, size = 0x12000, scoped, tag = 'internal scratch']
  #allocation2 [shape = 'f32[64,64]{1,0:T(8,128)}', space=vmem, size = 0x8000, scoped, tag = 'scratch operand']
  %s0 = inlined_call_operand.vmem [shape: f32[4,16,16], index: 0, kind: input, shape index: {}]
  %s1 = inlined_call_operand.vmem [shape: f32[4,16,32], index: 1, kind: input, shape index: {}]
  %s2 = inlined_call_operand.vmem [shape: f32[5,64,32], index: 2, kind: input, shape index: {}]
  %s3 = inlined_call_operand.vmem [shape: f32[5,32], index: 3, kind: input, shape index: {}]
  %s4 = inlined_call_operand.hbm [shape: f32[1,4,32], index: 4, kind: output, shape index: {}]
  %s5 = sld [smem:[#allocation0]]
  $region26: #{tpu_custom_call.1} parent=0
    _
  %s7 = ssub.s32 1, %s5
  %s8 = scalar_select 0, %s7, %s5
  $region1: #{tpu_custom_call.1} parent=0
    #allocation3 [shape = 'u8[2048]{0}', space=vmem, size = 0x800, scoped, tag = 'output window, operand 0, single buffered']
    #allocation4 [shape = 's32[1]{0}', space=sflag, size = 0x4, scoped, tag = 'scoped memory for tpu_custom_call.1']
    %9 = vsyncpa [#allocation4], 0
    // Predicated region
    $region2: #{tpu_custom_call.1} parent=1 // pred_check
      _
    $region3: #{tpu_custom_call.1} parent=1 // pred_check_branch
      %11 = sbr.rel (0) target = $region5
    $region4: #{tpu_custom_call.1} parent=1 // pred_region
      _
    $region5: #{tpu_custom_call.1} parent=1 // pred_fallthru
      _
    // Predicated region
    $region6: #{tpu_custom_call.1} parent=1 // pred_check
      _
    $region7: #{tpu_custom_call.1} parent=1 // pred_check_branch
      %13 = sbr.rel (0) target = $region9
    $region8: #{tpu_custom_call.1} parent=1 // pred_region
      _
    $region9: #{tpu_custom_call.1} parent=1 // pred_fallthru
      _
    // Predicated region
    $region10: #{tpu_custom_call.1} parent=1 // pred_check
      _
    $region11: #{tpu_custom_call.1} parent=1 // pred_check_branch
      %15 = sbr.rel (0) target = $region13
    $region12: #{tpu_custom_call.1} parent=1 // pred_region
      _
    $region13: #{tpu_custom_call.1} parent=1 // pred_fallthru
      _
    // Predicated region
    $region14: #{tpu_custom_call.1} parent=1 // pred_check
      _
    $region15: #{tpu_custom_call.1} parent=1 // pred_check_branch
      %17 = sbr.rel (0) target = $region17
    $region16: #{tpu_custom_call.1} parent=1 // pred_region
      _
    $region17: #{tpu_custom_call.1} parent=1 // pred_fallthru
      _
    %v19 = vld [vmem:[%s0] sm:$0xff]
    %v20 = vld [vmem:[%s0 + $0x8] sm:$0xff]
    %v21 = vld [vmem:[%s0 + $0x10] sm:$0xff]
    %v22 = vld [vmem:[%s0 + $0x18] sm:$0xff]
    %v23 = vld [vmem:[%s0 + $0x20] sm:$0xff]
    %v24 = vld [vmem:[%s0 + $0x28] sm:$0xff]
    %v25 = vld [vmem:[%s0 + $0x30] sm:$0xff]
    %v26 = vld [vmem:[%s0 + $0x38] sm:$0xff]
    %vm27 = vcmask 130048
    %v28 = vsel %vm27, %v19, 0.0
    %29 = vadd.xlane.f32.xlu0 %v28
    %v30 = vpop.xlane.xlu0 %29
    %v31 = vsel %vm27, %v20, 0.0
    %32 = vadd.xlane.f32.xlu0 %v31
    %v33 = vpop.xlane.xlu0 %32
    %v34 = vsel %vm27, %v21, 0.0
    %35 = vadd.xlane.f32.xlu0 %v34
    %v36 = vpop.xlane.xlu0 %35
    %v37 = vsel %vm27, %v22, 0.0
    %38 = vadd.xlane.f32.xlu0 %v37
    %v39 = vpop.xlane.xlu0 %38
    %v40 = vsel %vm27, %v23, 0.0
    %41 = vadd.xlane.f32.xlu0 %v40
    %v42 = vpop.xlane.xlu0 %41
    %v43 = vsel %vm27, %v24, 0.0
    %44 = vadd.xlane.f32.xlu0 %v43
    %v45 = vpop.xlane.xlu0 %44
    %v46 = vsel %vm27, %v25, 0.0
    %47 = vadd.xlane.f32.xlu0 %v46
    %v48 = vpop.xlane.xlu0 %47
    %v49 = vsel %vm27, %v26, 0.0
    %50 = vadd.xlane.f32.xlu0 %v49
    %v51 = vpop.xlane.xlu0 %50
    %v52 = vmax.f32 %v30, 1.0
    %v53 = vmax.f32 %v33, 1.0
    %v54 = vmax.f32 %v36, 1.0
    %v55 = vmax.f32 %v39, 1.0
    %v56 = vmax.f32 %v42, 1.0
    %v57 = vmax.f32 %v45, 1.0
    %v58 = vmax.f32 %v48, 1.0
    %v59 = vmax.f32 %v51, 1.0
    %v60 = vrcp.pop %v52
    %v61 = vmul.f32 1.0, %v60
    %v62 = vrcp.pop %v53
    %v63 = vmul.f32 1.0, %v62
    %v64 = vrcp.pop %v54
    %v65 = vmul.f32 1.0, %v64
    %v66 = vrcp.pop %v55
    %v67 = vmul.f32 1.0, %v66
    %v68 = vrcp.pop %v56
    %v69 = vmul.f32 1.0, %v68
    %v70 = vrcp.pop %v57
    %v71 = vmul.f32 1.0, %v70
    %v72 = vrcp.pop %v58
    %v73 = vmul.f32 1.0, %v72
    %v74 = vrcp.pop %v59
    %v75 = vmul.f32 1.0, %v74
    %v76 = vmul.f32 %v19, %v61
    %v77 = vmul.f32 %v20, %v63
    %v78 = vmul.f32 %v21, %v65
    %v79 = vmul.f32 %v22, %v67
    %v80 = vmul.f32 %v23, %v69
    %v81 = vmul.f32 %v24, %v71
    %v82 = vmul.f32 %v25, %v73
    %v83 = vmul.f32 %v26, %v75
    %vm84 = vcmask 523264
    %85 = vst.msk [vmem:[#allocation2] sm:$0xff] %vm84, 0.0
    %86 = vst.msk [vmem:[#allocation2 + $0x8] sm:$0xff] %vm84, 0.0
    %87 = vst.msk [vmem:[#allocation2 + $0x10] sm:$0xff] %vm84, 0.0
    %88 = vst.msk [vmem:[#allocation2 + $0x18] sm:$0xff] %vm84, 0.0
    %89 = vst.msk [vmem:[#allocation2 + $0x20] sm:$0xff] %vm84, 0.0
    %90 = vst.msk [vmem:[#allocation2 + $0x28] sm:$0xff] %vm84, 0.0
    %91 = vst.msk [vmem:[#allocation2 + $0x30] sm:$0xff] %vm84, 0.0
    %92 = vst.msk [vmem:[#allocation2 + $0x38] sm:$0xff] %vm84, 0.0
    %93 = vst.msk [vmem:[#allocation2] sm:$0xff] %vm27, %v76
    %94 = vst.msk [vmem:[#allocation2 + $0x8] sm:$0xff] %vm27, %v77
    %97 = vrot.lane.b32.xlu0 %v78, 16
    %v98 = vpop.permute.xlu0 %97
    %99 = vrot.lane.b32.xlu0 %v79, 16
    %v100 = vpop.permute.xlu0 %99
    %vm103 = vcmask 261248
    %104 = vst.msk [vmem:[#allocation2 + $0x10] sm:$0xff] %vm103, %v98
    %105 = vst.msk [vmem:[#allocation2 + $0x18] sm:$0xff] %vm103, %v100
    %108 = vrot.lane.b32.xlu0 %v80, 32
    %v109 = vpop.permute.xlu0 %108
    %110 = vrot.lane.b32.xlu0 %v81, 32
    %v111 = vpop.permute.xlu0 %110
    %vm114 = vcmask 392448
    %115 = vst.msk [vmem:[#allocation2 + $0x20] sm:$0xff] %vm114, %v109
    %116 = vst.msk [vmem:[#allocation2 + $0x28] sm:$0xff] %vm114, %v111
    %119 = vrot.lane.b32.xlu0 %v82, 48
    %v120 = vpop.permute.xlu0 %119
    %121 = vrot.lane.b32.xlu0 %v83, 48
    %v122 = vpop.permute.xlu0 %121
    %vm125 = vcmask 523648
    %126 = vst.msk [vmem:[#allocation2 + $0x30] sm:$0xff] %vm125, %v120
    %127 = vst.msk [vmem:[#allocation2 + $0x38] sm:$0xff] %vm125, %v122
    %v128 = vld [vmem:[#allocation2] sm:$0xff]
    %v129 = vld [vmem:[#allocation2 + $0x8] sm:$0xff]
    %v130 = vld [vmem:[#allocation2 + $0x10] sm:$0xff]
    %v131 = vld [vmem:[#allocation2 + $0x18] sm:$0xff]
    %v132 = vld [vmem:[#allocation2 + $0x20] sm:$0xff]
    %v133 = vld [vmem:[#allocation2 + $0x28] sm:$0xff]
    %v134 = vld [vmem:[#allocation2 + $0x30] sm:$0xff]
    %v135 = vld [vmem:[#allocation2 + $0x38] sm:$0xff]
    %v136 = vpack.c.bf16 %v129, %v128
    %v137 = vpack.c.bf16 %v131, %v130
    %v138 = vpack.c.bf16 %v133, %v132
    %v139 = vpack.c.bf16 %v135, %v134
    %v140 = vld [vmem:[%s1] sm:$0xff]
    %v141 = vld [vmem:[%s1 + $0x8] sm:$0xff]
    %v142 = vld [vmem:[%s1 + $0x10] sm:$0xff]
    %v143 = vld [vmem:[%s1 + $0x18] sm:$0xff]
    %v144 = vld [vmem:[%s1 + $0x20] sm:$0xff]
    %v145 = vld [vmem:[%s1 + $0x28] sm:$0xff]
    %v146 = vld [vmem:[%s1 + $0x30] sm:$0xff]
    %v147 = vld [vmem:[%s1 + $0x38] sm:$0xff]
    %v148 = vpack.c.bf16 %v141, %v140
    %v149 = vpack.c.bf16 %v143, %v142
    %v150 = vpack.c.bf16 %v145, %v144
    %v151 = vpack.c.bf16 %v147, %v146
    %v153 = vsel %vm84, %v136, 0
    %v156 = vsel %vm84, %v137, 0
    %v159 = vsel %vm84, %v138, 0
    %v162 = vsel %vm84, %v139, 0
    %164 = vmatprep.subr.bf16.mxu0 0
    %165 = vmatpush1.bf16.msra.mxu0 %v148
    %166 = vmatprep.subr.bf16.mxu0 0
    %167 = vmatpush1.bf16.msra.mxu0 %v149
    %168 = vmatprep.subr.bf16.mxu0 0
    %169 = vmatpush1.bf16.msra.mxu0 %v150
    %170 = vmatprep.subr.bf16.mxu0 0
    %171 = vmatpush1.bf16.msra.mxu0 %v151
    %172 = vmatprep.subr.bf16.mxu0 0
    %173 = vmatpush1.bf16.msra.mxu0 0
    %174 = vmatprep.subr.bf16.mxu0 0
    %175 = vmatpush1.bf16.msra.mxu0 0
    %176 = vmatprep.subr.bf16.mxu0 0
    %177 = vmatpush1.bf16.msra.mxu0 0
    %178 = vmatprep.subr.bf16.mxu0 0
    %179 = vmatpush1.bf16.msra.mxu0 0
    %180 = vmatprep.subr.bf16.mxu0 0
    %181 = vmatpush1.bf16.msra.mxu0 0
    %182 = vmatprep.subr.bf16.mxu0 0
    %183 = vmatpush1.bf16.msra.mxu0 0
    %184 = vmatprep.subr.bf16.mxu0 0
    %185 = vmatpush1.bf16.msra.mxu0 0
    %186 = vmatprep.subr.bf16.mxu0 0
    %187 = vmatpush1.bf16.msra.mxu0 0
    %188 = vmatprep.subr.bf16.mxu0 0
    %189 = vmatpush1.bf16.msra.mxu0 0
    %190 = vmatprep.subr.bf16.mxu0 0
    %191 = vmatpush1.bf16.msra.mxu0 0
    %192 = vmatprep.subr.bf16.mxu0 0
    %193 = vmatpush1.bf16.msra.mxu0 0
    %194 = vmatprep.subr.bf16.mxu0 0
    %195 = vmatpush1.bf16.msra.mxu0 0
    %196 = vmatprep.mubr.bf16.mxu0 0
    %197 = vmatmul.mubr.bf16.gmra.mrb[0].mxu0 %v153
    %v198 = vpop.f32.mrb[0].mxu0
    %v199 = vadd.f32 0.0, %v198
    %v200 = vpop.f32.mrb[0].mxu0
    %v201 = vpop.f32.mrb[0].mxu0
    %v202 = vadd.f32 0.0, %v201
    %v203 = vpop.f32.mrb[0].mxu0
    %204 = vmatprep.mubr.bf16.mxu0 0
    %205 = vmatmul.mubr.bf16.gmra.mrb[0].mxu0 %v156
    %v206 = vpop.f32.mrb[0].mxu0
    %v207 = vadd.f32 0.0, %v206
    %v208 = vpop.f32.mrb[0].mxu0
    %v209 = vpop.f32.mrb[0].mxu0
    %v210 = vadd.f32 0.0, %v209
    %v211 = vpop.f32.mrb[0].mxu0
    %212 = vmatprep.mubr.bf16.mxu0 0
    %213 = vmatmul.mubr.bf16.gmra.mrb[0].mxu0 %v159
    %v214 = vpop.f32.mrb[0].mxu0
    %v215 = vadd.f32 0.0, %v214
    %v216 = vpop.f32.mrb[0].mxu0
    %v217 = vpop.f32.mrb[0].mxu0
    %v218 = vadd.f32 0.0, %v217
    %v219 = vpop.f32.mrb[0].mxu0
    %220 = vmatprep.mubr.bf16.mxu0 0
    %221 = vmatmul.mubr.bf16.gmra.mrb[0].mxu0 %v162
    %v222 = vpop.f32.mrb[0].mxu0
    %v223 = vadd.f32 0.0, %v222
    %v224 = vpop.f32.mrb[0].mxu0
    %v225 = vpop.f32.mrb[0].mxu0
    %v226 = vadd.f32 0.0, %v225
    %v227 = vpop.f32.mrb[0].mxu0
    %228 = vdwg.mxu0
    %v229 = vld [vmem:[%s2] sm:$0xff]
    %v230 = vld [vmem:[%s2 + $0x8] sm:$0xff]
    %v231 = vld [vmem:[%s2 + $0x10] sm:$0xff]
    %v232 = vld [vmem:[%s2 + $0x18] sm:$0xff]
    %v233 = vld [vmem:[%s2 + $0x20] sm:$0xff]
    %v234 = vld [vmem:[%s2 + $0x28] sm:$0xff]
    %v235 = vld [vmem:[%s2 + $0x30] sm:$0xff]
    %v236 = vld [vmem:[%s2 + $0x38] sm:$0xff]
    %v237 = vpack.c.bf16 %v202, %v199
    %v238 = vpack.c.bf16 %v210, %v207
    %v239 = vpack.c.bf16 %v218, %v215
    %v240 = vpack.c.bf16 %v226, %v223
    %v241 = vpack.c.bf16 %v230, %v229
    %v242 = vpack.c.bf16 %v232, %v231
    %v243 = vpack.c.bf16 %v234, %v233
    %v244 = vpack.c.bf16 %v236, %v235
    %vm245 = vcmask 261120
    %v247 = vsel %vm245, %v148, 0
    %v250 = vsel %vm245, %v149, 0
    %v253 = vsel %vm245, %v150, 0
    %v256 = vsel %vm245, %v151, 0
    %258 = vmatprep.subr.bf16.mxu0 0
    %259 = vmatpush1.bf16.msra.mxu0 %v243
    %260 = vmatprep.subr.bf16.mxu0 0
    %261 = vmatpush1.bf16.msra.mxu0 %v244
    %262 = vmatprep.subr.bf16.mxu0 0
    %263 = vmatpush1.bf16.msra.mxu0 0
    %264 = vmatprep.subr.bf16.mxu0 0
    %265 = vmatpush1.bf16.msra.mxu0 0
    %266 = vmatprep.subr.bf16.mxu0 0
    %267 = vmatpush1.bf16.msra.mxu0 0
    %268 = vmatprep.subr.bf16.mxu0 0
    %269 = vmatpush1.bf16.msra.mxu0 0
    %270 = vmatprep.subr.bf16.mxu0 0
    %271 = vmatpush1.bf16.msra.mxu0 0
    %272 = vmatprep.subr.bf16.mxu0 0
    %273 = vmatpush1.bf16.msra.mxu0 0
    %274 = vmatprep.subr.bf16.mxu0 0
    %275 = vmatpush1.bf16.msra.mxu0 0
    %276 = vmatprep.subr.bf16.mxu0 0
    %277 = vmatpush1.bf16.msra.mxu0 0
    %278 = vmatprep.subr.bf16.mxu0 0
    %279 = vmatpush1.bf16.msra.mxu0 0
    %280 = vmatprep.subr.bf16.mxu0 0
    %281 = vmatpush1.bf16.msra.mxu0 0
    %282 = vmatprep.subr.bf16.mxu0 0
    %283 = vmatpush1.bf16.msra.mxu0 0
    %284 = vmatprep.subr.bf16.mxu0 0
    %285 = vmatpush1.bf16.msra.mxu0 0
    %286 = vmatprep.subr.bf16.mxu0 0
    %287 = vmatpush1.bf16.msra.mxu0 0
    %288 = vmatprep.subr.bf16.mxu0 0
    %289 = vmatpush1.bf16.msra.mxu0 0
    %290 = vmatprep.mubr.bf16.mxu0 0
    %291 = vmatmul.mubr.bf16.gmra.mrb[0].mxu0 %v247
    %v292 = vpop.f32.mrb[0].mxu0
    %v293 = vadd.f32 0.0, %v292
    %v294 = vpop.f32.mrb[0].mxu0
    %v295 = vpop.f32.mrb[0].mxu0
    %v296 = vadd.f32 0.0, %v295
    %v297 = vpop.f32.mrb[0].mxu0
    %298 = vmatprep.mubr.bf16.mxu0 0
    %299 = vmatmul.mubr.bf16.gmra.mrb[0].mxu0 %v250
    %v300 = vpop.f32.mrb[0].mxu0
    %v301 = vadd.f32 0.0, %v300
    %v302 = vpop.f32.mrb[0].mxu0
    %v303 = vpop.f32.mrb[0].mxu0
    %v304 = vadd.f32 0.0, %v303
    %v305 = vpop.f32.mrb[0].mxu0
    %306 = vmatprep.mubr.bf16.mxu0 0
    %307 = vmatmul.mubr.bf16.gmra.mrb[0].mxu0 %v253
    %v308 = vpop.f32.mrb[0].mxu0
    %v309 = vadd.f32 0.0, %v308
    %v310 = vpop.f32.mrb[0].mxu0
    %v311 = vpop.f32.mrb[0].mxu0
    %v312 = vadd.f32 0.0, %v311
    %v313 = vpop.f32.mrb[0].mxu0
    %314 = vmatprep.mubr.bf16.mxu0 0
    %315 = vmatmul.mubr.bf16.gmra.mrb[0].mxu0 %v256
    %v316 = vpop.f32.mrb[0].mxu0
    %v317 = vadd.f32 0.0, %v316
    %v318 = vpop.f32.mrb[0].mxu0
    %v319 = vpop.f32.mrb[0].mxu0
    %v320 = vadd.f32 0.0, %v319
    %v321 = vpop.f32.mrb[0].mxu0
    %322 = vdwg.mxu0
    %v324 = vsel %vm245, %v237, 0
    %v327 = vsel %vm245, %v238, 0
    %v330 = vsel %vm245, %v239, 0
    %v333 = vsel %vm245, %v240, 0
    %335 = vmatprep.subr.bf16.mxu0 0
    %336 = vmatpush1.bf16.msra.mxu0 %v241
    %337 = vmatprep.subr.bf16.mxu0 0
    %338 = vmatpush1.bf16.msra.mxu0 %v242
    %339 = vmatprep.subr.bf16.mxu0 0
    %340 = vmatpush1.bf16.msra.mxu0 0
    %341 = vmatprep.subr.bf16.mxu0 0
    %342 = vmatpush1.bf16.msra.mxu0 0
    %343 = vmatprep.subr.bf16.mxu0 0
    %344 = vmatpush1.bf16.msra.mxu0 0
    %345 = vmatprep.subr.bf16.mxu0 0
    %346 = vmatpush1.bf16.msra.mxu0 0
    %347 = vmatprep.subr.bf16.mxu0 0
    %348 = vmatpush1.bf16.msra.mxu0 0
    %349 = vmatprep.subr.bf16.mxu0 0
    %350 = vmatpush1.bf16.msra.mxu0 0
    %351 = vmatprep.subr.bf16.mxu0 0
    %352 = vmatpush1.bf16.msra.mxu0 0
    %353 = vmatprep.subr.bf16.mxu0 0
    %354 = vmatpush1.bf16.msra.mxu0 0
    %355 = vmatprep.subr.bf16.mxu0 0
    %356 = vmatpush1.bf16.msra.mxu0 0
    %357 = vmatprep.subr.bf16.mxu0 0
    %358 = vmatpush1.bf16.msra.mxu0 0
    %359 = vmatprep.subr.bf16.mxu0 0
    %360 = vmatpush1.bf16.msra.mxu0 0
    %361 = vmatprep.subr.bf16.mxu0 0
    %362 = vmatpush1.bf16.msra.mxu0 0
    %363 = vmatprep.subr.bf16.mxu0 0
    %364 = vmatpush1.bf16.msra.mxu0 0
    %365 = vmatprep.subr.bf16.mxu0 0
    %366 = vmatpush1.bf16.msra.mxu0 0
    %367 = vmatprep.mubr.bf16.mxu0 0
    %368 = vmatmul.mubr.bf16.gmra.mrb[0].mxu0 %v324
    %v369 = vpop.f32.mrb[0].mxu0
    %v370 = vadd.f32 %v293, %v369
    %v371 = vpop.f32.mrb[0].mxu0
    %v372 = vpop.f32.mrb[0].mxu0
    %v373 = vadd.f32 %v296, %v372
    %v374 = vpop.f32.mrb[0].mxu0
    %375 = vmatprep.mubr.bf16.mxu0 0
    %376 = vmatmul.mubr.bf16.gmra.mrb[0].mxu0 %v327
    %v377 = vpop.f32.mrb[0].mxu0
    %v378 = vadd.f32 %v301, %v377
    %v379 = vpop.f32.mrb[0].mxu0
    %v380 = vpop.f32.mrb[0].mxu0
    %v381 = vadd.f32 %v304, %v380
    %v382 = vpop.f32.mrb[0].mxu0
    %383 = vmatprep.mubr.bf16.mxu0 0
    %384 = vmatmul.mubr.bf16.gmra.mrb[0].mxu0 %v330
    %v385 = vpop.f32.mrb[0].mxu0
    %v386 = vadd.f32 %v309, %v385
    %v387 = vpop.f32.mrb[0].mxu0
    %v388 = vpop.f32.mrb[0].mxu0
    %v389 = vadd.f32 %v312, %v388
    %v390 = vpop.f32.mrb[0].mxu0
    %391 = vmatprep.mubr.bf16.mxu0 0
    %392 = vmatmul.mubr.bf16.gmra.mrb[0].mxu0 %v333
    %v393 = vpop.f32.mrb[0].mxu0
    %v394 = vadd.f32 %v317, %v393
    %v395 = vpop.f32.mrb[0].mxu0
    %v396 = vpop.f32.mrb[0].mxu0
    %v397 = vadd.f32 %v320, %v396
    %v398 = vpop.f32.mrb[0].mxu0
    %399 = vdwg.mxu0
    %v400 = vld [vmem:[%s3] sm:$0x1]
    %v401 = vlaneseq
    %v402 = vshrl.u32 %v401, 7
    %v403 = vsub.s32 0, %v402
    %v404 = vrot.slane %v400, %v403
    %v405 = vadd.f32 %v370, %v404
    %v406 = vadd.f32 %v373, %v404
    %v407 = vadd.f32 %v378, %v404
    %v408 = vadd.f32 %v381, %v404
    %v409 = vadd.f32 %v386, %v404
    %v410 = vadd.f32 %v389, %v404
    %v411 = vadd.f32 %v394, %v404
    %v412 = vadd.f32 %v397, %v404
    %v413 = vmax.f32 %v405, 0.0
    %v414 = vmax.f32 %v406, 0.0
    %v415 = vmax.f32 %v407, 0.0
    %v416 = vmax.f32 %v408, 0.0
    %v417 = vmax.f32 %v409, 0.0
    %v418 = vmax.f32 %v410, 0.0
    %v419 = vmax.f32 %v411, 0.0
    %v420 = vmax.f32 %v412, 0.0
    %v421 = vpack.c.bf16 %v414, %v413
    %v422 = vpack.c.bf16 %v416, %v415
    %v423 = vpack.c.bf16 %v418, %v417
    %v424 = vpack.c.bf16 %v420, %v419
    %425 = vmatprep.subr.bf16.mxu0 0
    %426 = vmatpush1.bf16.msra.mxu0 %v421
    %427 = vmatprep.subr.bf16.mxu0 0
    %428 = vmatpush1.bf16.msra.mxu0 %v422
    %429 = vmatprep.subr.bf16.mxu0 0
    %430 = vmatpush1.bf16.msra.mxu0 %v423
    %431 = vmatprep.subr.bf16.mxu0 0
    %432 = vmatpush1.bf16.msra.mxu0 %v424
    %433 = vmatprep.subr.bf16.mxu0 0
    %434 = vmatpush1.bf16.msra.mxu0 0
    %435 = vmatprep.subr.bf16.mxu0 0
    %436 = vmatpush1.bf16.msra.mxu0 0
    %437 = vmatprep.subr.bf16.mxu0 0
    %438 = vmatpush1.bf16.msra.mxu0 0
    %439 = vmatprep.subr.bf16.mxu0 0
    %440 = vmatpush1.bf16.msra.mxu0 0
    %441 = vmatprep.subr.bf16.mxu0 0
    %442 = vmatpush1.bf16.msra.mxu0 0
    %443 = vmatprep.subr.bf16.mxu0 0
    %444 = vmatpush1.bf16.msra.mxu0 0
    %445 = vmatprep.subr.bf16.mxu0 0
    %446 = vmatpush1.bf16.msra.mxu0 0
    %447 = vmatprep.subr.bf16.mxu0 0
    %448 = vmatpush1.bf16.msra.mxu0 0
    %449 = vmatprep.subr.bf16.mxu0 0
    %450 = vmatpush1.bf16.msra.mxu0 0
    %451 = vmatprep.subr.bf16.mxu0 0
    %452 = vmatpush1.bf16.msra.mxu0 0
    %453 = vmatprep.subr.bf16.mxu0 0
    %454 = vmatpush1.bf16.msra.mxu0 0
    %455 = vmatprep.subr.bf16.mxu0 0
    %456 = vmatpush1.bf16.msra.mxu0 0
    %457 = vmatprep.mubr.bf16.mxu0 0
    %458 = vmatmul.mubr.bf16.gmra.mrb[0].mxu0 %v153
    %v459 = vpop.f32.mrb[0].mxu0
    %v460 = vadd.f32 0.0, %v459
    %v461 = vpop.f32.mrb[0].mxu0
    %v462 = vpop.f32.mrb[0].mxu0
    %v463 = vadd.f32 0.0, %v462
    %v464 = vpop.f32.mrb[0].mxu0
    %465 = vmatprep.mubr.bf16.mxu0 0
    %466 = vmatmul.mubr.bf16.gmra.mrb[0].mxu0 %v156
    %v467 = vpop.f32.mrb[0].mxu0
    %v468 = vadd.f32 0.0, %v467
    %v469 = vpop.f32.mrb[0].mxu0
    %v470 = vpop.f32.mrb[0].mxu0
    %v471 = vadd.f32 0.0, %v470
    %v472 = vpop.f32.mrb[0].mxu0
    %473 = vmatprep.mubr.bf16.mxu0 0
    %474 = vmatmul.mubr.bf16.gmra.mrb[0].mxu0 %v159
    %v475 = vpop.f32.mrb[0].mxu0
    %v476 = vadd.f32 0.0, %v475
    %v477 = vpop.f32.mrb[0].mxu0
    %v478 = vpop.f32.mrb[0].mxu0
    %v479 = vadd.f32 0.0, %v478
    %v480 = vpop.f32.mrb[0].mxu0
    %481 = vmatprep.mubr.bf16.mxu0 0
    %482 = vmatmul.mubr.bf16.gmra.mrb[0].mxu0 %v162
    %v483 = vpop.f32.mrb[0].mxu0
    %v484 = vadd.f32 0.0, %v483
    %v485 = vpop.f32.mrb[0].mxu0
    %v486 = vpop.f32.mrb[0].mxu0
    %v487 = vadd.f32 0.0, %v486
    %v488 = vpop.f32.mrb[0].mxu0
    %489 = vdwg.mxu0
    %s490 = scalar_lea.vmem %s2, 64
    %v491 = vld [vmem:[%s490] sm:$0xff]
    %v492 = vld [vmem:[%s490 + $0x8] sm:$0xff]
    %v493 = vld [vmem:[%s490 + $0x10] sm:$0xff]
    %v494 = vld [vmem:[%s490 + $0x18] sm:$0xff]
    %v495 = vld [vmem:[%s490 + $0x20] sm:$0xff]
    %v496 = vld [vmem:[%s490 + $0x28] sm:$0xff]
    %v497 = vld [vmem:[%s490 + $0x30] sm:$0xff]
    %v498 = vld [vmem:[%s490 + $0x38] sm:$0xff]
    %v499 = vpack.c.bf16 %v463, %v460
    %v500 = vpack.c.bf16 %v471, %v468
    %v501 = vpack.c.bf16 %v479, %v476
    %v502 = vpack.c.bf16 %v487, %v484
    %v503 = vpack.c.bf16 %v492, %v491
    %v504 = vpack.c.bf16 %v494, %v493
    %v505 = vpack.c.bf16 %v496, %v495
    %v506 = vpack.c.bf16 %v498, %v497
    %v508 = vsel %vm245, %v421, 0
    %v511 = vsel %vm245, %v422, 0
    %v514 = vsel %vm245, %v423, 0
    %v517 = vsel %vm245, %v424, 0
    %519 = vmatprep.subr.bf16.mxu0 0
    %520 = vmatpush1.bf16.msra.mxu0 %v505
    %521 = vmatprep.subr.bf16.mxu0 0
    %522 = vmatpush1.bf16.msra.mxu0 %v506
    %523 = vmatprep.subr.bf16.mxu0 0
    %524 = vmatpush1.bf16.msra.mxu0 0
    %525 = vmatprep.subr.bf16.mxu0 0
    %526 = vmatpush1.bf16.msra.mxu0 0
    %527 = vmatprep.subr.bf16.mxu0 0
    %528 = vmatpush1.bf16.msra.mxu0 0
    %529 = vmatprep.subr.bf16.mxu0 0
    %530 = vmatpush1.bf16.msra.mxu0 0
    %531 = vmatprep.subr.bf16.mxu0 0
    %532 = vmatpush1.bf16.msra.mxu0 0
    %533 = vmatprep.subr.bf16.mxu0 0
    %534 = vmatpush1.bf16.msra.mxu0 0
    %535 = vmatprep.subr.bf16.mxu0 0
    %536 = vmatpush1.bf16.msra.mxu0 0
    %537 = vmatprep.subr.bf16.mxu0 0
    %538 = vmatpush1.bf16.msra.mxu0 0
    %539 = vmatprep.subr.bf16.mxu0 0
    %540 = vmatpush1.bf16.msra.mxu0 0
    %541 = vmatprep.subr.bf16.mxu0 0
    %542 = vmatpush1.bf16.msra.mxu0 0
    %543 = vmatprep.subr.bf16.mxu0 0
    %544 = vmatpush1.bf16.msra.mxu0 0
    %545 = vmatprep.subr.bf16.mxu0 0
    %546 = vmatpush1.bf16.msra.mxu0 0
    %547 = vmatprep.subr.bf16.mxu0 0
    %548 = vmatpush1.bf16.msra.mxu0 0
    %549 = vmatprep.subr.bf16.mxu0 0
    %550 = vmatpush1.bf16.msra.mxu0 0
    %551 = vmatprep.mubr.bf16.mxu0 0
    %552 = vmatmul.mubr.bf16.gmra.mrb[0].mxu0 %v508
    %v553 = vpop.f32.mrb[0].mxu0
    %v554 = vadd.f32 0.0, %v553
    %v555 = vpop.f32.mrb[0].mxu0
    %v556 = vpop.f32.mrb[0].mxu0
    %v557 = vadd.f32 0.0, %v556
    %v558 = vpop.f32.mrb[0].mxu0
    %559 = vmatprep.mubr.bf16.mxu0 0
    %560 = vmatmul.mubr.bf16.gmra.mrb[0].mxu0 %v511
    %v561 = vpop.f32.mrb[0].mxu0
    %v562 = vadd.f32 0.0, %v561
    %v563 = vpop.f32.mrb[0].mxu0
    %v564 = vpop.f32.mrb[0].mxu0
    %v565 = vadd.f32 0.0, %v564
    %v566 = vpop.f32.mrb[0].mxu0
    %567 = vmatprep.mubr.bf16.mxu0 0
    %568 = vmatmul.mubr.bf16.gmra.mrb[0].mxu0 %v514
    %v569 = vpop.f32.mrb[0].mxu0
    %v570 = vadd.f32 0.0, %v569
    %v571 = vpop.f32.mrb[0].mxu0
    %v572 = vpop.f32.mrb[0].mxu0
    %v573 = vadd.f32 0.0, %v572
    %v574 = vpop.f32.mrb[0].mxu0
    %575 = vmatprep.mubr.bf16.mxu0 0
    %576 = vmatmul.mubr.bf16.gmra.mrb[0].mxu0 %v517
    %v577 = vpop.f32.mrb[0].mxu0
    %v578 = vadd.f32 0.0, %v577
    %v579 = vpop.f32.mrb[0].mxu0
    %v580 = vpop.f32.mrb[0].mxu0
    %v581 = vadd.f32 0.0, %v580
    %v582 = vpop.f32.mrb[0].mxu0
    %583 = vdwg.mxu0
    %v585 = vsel %vm245, %v499, 0
    %v588 = vsel %vm245, %v500, 0
    %v591 = vsel %vm245, %v501, 0
    %v594 = vsel %vm245, %v502, 0
    %596 = vmatprep.subr.bf16.mxu0 0
    %597 = vmatpush1.bf16.msra.mxu0 %v503
    %598 = vmatprep.subr.bf16.mxu0 0
    %599 = vmatpush1.bf16.msra.mxu0 %v504
    %600 = vmatprep.subr.bf16.mxu0 0
    %601 = vmatpush1.bf16.msra.mxu0 0
    %602 = vmatprep.subr.bf16.mxu0 0
    %603 = vmatpush1.bf16.msra.mxu0 0
    %604 = vmatprep.subr.bf16.mxu0 0
    %605 = vmatpush1.bf16.msra.mxu0 0
    %606 = vmatprep.subr.bf16.mxu0 0
    %607 = vmatpush1.bf16.msra.mxu0 0
    %608 = vmatprep.subr.bf16.mxu0 0
    %609 = vmatpush1.bf16.msra.mxu0 0
    %610 = vmatprep.subr.bf16.mxu0 0
    %611 = vmatpush1.bf16.msra.mxu0 0
    %612 = vmatprep.subr.bf16.mxu0 0
    %613 = vmatpush1.bf16.msra.mxu0 0
    %614 = vmatprep.subr.bf16.mxu0 0
    %615 = vmatpush1.bf16.msra.mxu0 0
    %616 = vmatprep.subr.bf16.mxu0 0
    %617 = vmatpush1.bf16.msra.mxu0 0
    %618 = vmatprep.subr.bf16.mxu0 0
    %619 = vmatpush1.bf16.msra.mxu0 0
    %620 = vmatprep.subr.bf16.mxu0 0
    %621 = vmatpush1.bf16.msra.mxu0 0
    %622 = vmatprep.subr.bf16.mxu0 0
    %623 = vmatpush1.bf16.msra.mxu0 0
    %624 = vmatprep.subr.bf16.mxu0 0
    %625 = vmatpush1.bf16.msra.mxu0 0
    %626 = vmatprep.subr.bf16.mxu0 0
    %627 = vmatpush1.bf16.msra.mxu0 0
    %628 = vmatprep.mubr.bf16.mxu0 0
    %629 = vmatmul.mubr.bf16.gmra.mrb[0].mxu0 %v585
    %v630 = vpop.f32.mrb[0].mxu0
    %v631 = vadd.f32 %v554, %v630
    %v632 = vpop.f32.mrb[0].mxu0
    %v633 = vpop.f32.mrb[0].mxu0
    %v634 = vadd.f32 %v557, %v633
    %v635 = vpop.f32.mrb[0].mxu0
    %636 = vmatprep.mubr.bf16.mxu0 0
    %637 = vmatmul.mubr.bf16.gmra.mrb[0].mxu0 %v588
    %v638 = vpop.f32.mrb[0].mxu0
    %v639 = vadd.f32 %v562, %v638
    %v640 = vpop.f32.mrb[0].mxu0
    %v641 = vpop.f32.mrb[0].mxu0
    %v642 = vadd.f32 %v565, %v641
    %v643 = vpop.f32.mrb[0].mxu0
    %644 = vmatprep.mubr.bf16.mxu0 0
    %645 = vmatmul.mubr.bf16.gmra.mrb[0].mxu0 %v591
    %v646 = vpop.f32.mrb[0].mxu0
    %v647 = vadd.f32 %v570, %v646
    %v648 = vpop.f32.mrb[0].mxu0
    %v649 = vpop.f32.mrb[0].mxu0
    %v650 = vadd.f32 %v573, %v649
    %v651 = vpop.f32.mrb[0].mxu0
    %652 = vmatprep.mubr.bf16.mxu0 0
    %653 = vmatmul.mubr.bf16.gmra.mrb[0].mxu0 %v594
    %v654 = vpop.f32.mrb[0].mxu0
    %v655 = vadd.f32 %v578, %v654
    %v656 = vpop.f32.mrb[0].mxu0
    %v657 = vpop.f32.mrb[0].mxu0
    %v658 = vadd.f32 %v581, %v657
    %v659 = vpop.f32.mrb[0].mxu0
    %660 = vdwg.mxu0
    %v661 = vld [vmem:[%s3 + $0x1] sm:$0x1]
    %v662 = vlaneseq
    %v663 = vshrl.u32 %v662, 7
    %v664 = vsub.s32 0, %v663
    %v665 = vrot.slane %v661, %v664
    %v666 = vadd.f32 %v631, %v665
    %v667 = vadd.f32 %v634, %v665
    %v668 = vadd.f32 %v639, %v665
    %v669 = vadd.f32 %v642, %v665
    %v670 = vadd.f32 %v647, %v665
    %v671 = vadd.f32 %v650, %v665
    %v672 = vadd.f32 %v655, %v665
    %v673 = vadd.f32 %v658, %v665
    %v674 = vmax.f32 %v666, 0.0
    %v675 = vmax.f32 %v667, 0.0
    %v676 = vmax.f32 %v668, 0.0
    %v677 = vmax.f32 %v669, 0.0
    %v678 = vmax.f32 %v670, 0.0
    %v679 = vmax.f32 %v671, 0.0
    %v680 = vmax.f32 %v672, 0.0
    %v681 = vmax.f32 %v673, 0.0
    %v682 = vpack.c.bf16 %v675, %v674
    %v683 = vpack.c.bf16 %v677, %v676
    %v684 = vpack.c.bf16 %v679, %v678
    %v685 = vpack.c.bf16 %v681, %v680
    %686 = vmatprep.subr.bf16.mxu0 0
    %687 = vmatpush1.bf16.msra.mxu0 %v682
    %688 = vmatprep.subr.bf16.mxu0 0
    %689 = vmatpush1.bf16.msra.mxu0 %v683
    %690 = vmatprep.subr.bf16.mxu0 0
    %691 = vmatpush1.bf16.msra.mxu0 %v684
    %692 = vmatprep.subr.bf16.mxu0 0
    %693 = vmatpush1.bf16.msra.mxu0 %v685
    %694 = vmatprep.subr.bf16.mxu0 0
    %695 = vmatpush1.bf16.msra.mxu0 0
    %696 = vmatprep.subr.bf16.mxu0 0
    %697 = vmatpush1.bf16.msra.mxu0 0
    %698 = vmatprep.subr.bf16.mxu0 0
    %699 = vmatpush1.bf16.msra.mxu0 0
    %700 = vmatprep.subr.bf16.mxu0 0
    %701 = vmatpush1.bf16.msra.mxu0 0
    %702 = vmatprep.subr.bf16.mxu0 0
    %703 = vmatpush1.bf16.msra.mxu0 0
    %704 = vmatprep.subr.bf16.mxu0 0
    %705 = vmatpush1.bf16.msra.mxu0 0
    %706 = vmatprep.subr.bf16.mxu0 0
    %707 = vmatpush1.bf16.msra.mxu0 0
    %708 = vmatprep.subr.bf16.mxu0 0
    %709 = vmatpush1.bf16.msra.mxu0 0
    %710 = vmatprep.subr.bf16.mxu0 0
    %711 = vmatpush1.bf16.msra.mxu0 0
    %712 = vmatprep.subr.bf16.mxu0 0
    %713 = vmatpush1.bf16.msra.mxu0 0
    %714 = vmatprep.subr.bf16.mxu0 0
    %715 = vmatpush1.bf16.msra.mxu0 0
    %716 = vmatprep.subr.bf16.mxu0 0
    %717 = vmatpush1.bf16.msra.mxu0 0
    %718 = vmatprep.mubr.bf16.mxu0 0
    %719 = vmatmul.mubr.bf16.gmra.mrb[0].mxu0 %v153
    %v720 = vpop.f32.mrb[0].mxu0
    %v721 = vadd.f32 0.0, %v720
    %v722 = vpop.f32.mrb[0].mxu0
    %v723 = vpop.f32.mrb[0].mxu0
    %v724 = vadd.f32 0.0, %v723
    %v725 = vpop.f32.mrb[0].mxu0
    %726 = vmatprep.mubr.bf16.mxu0 0
    %727 = vmatmul.mubr.bf16.gmra.mrb[0].mxu0 %v156
    %v728 = vpop.f32.mrb[0].mxu0
    %v729 = vadd.f32 0.0, %v728
    %v730 = vpop.f32.mrb[0].mxu0
    %v731 = vpop.f32.mrb[0].mxu0
    %v732 = vadd.f32 0.0, %v731
    %v733 = vpop.f32.mrb[0].mxu0
    %734 = vmatprep.mubr.bf16.mxu0 0
    %735 = vmatmul.mubr.bf16.gmra.mrb[0].mxu0 %v159
    %v736 = vpop.f32.mrb[0].mxu0
    %v737 = vadd.f32 0.0, %v736
    %v738 = vpop.f32.mrb[0].mxu0
    %v739 = vpop.f32.mrb[0].mxu0
    %v740 = vadd.f32 0.0, %v739
    %v741 = vpop.f32.mrb[0].mxu0
    %742 = vmatprep.mubr.bf16.mxu0 0
    %743 = vmatmul.mubr.bf16.gmra.mrb[0].mxu0 %v162
    %v744 = vpop.f32.mrb[0].mxu0
    %v745 = vadd.f32 0.0, %v744
    %v746 = vpop.f32.mrb[0].mxu0
    %v747 = vpop.f32.mrb[0].mxu0
    %v748 = vadd.f32 0.0, %v747
    %v749 = vpop.f32.mrb[0].mxu0
    %750 = vdwg.mxu0
    %s751 = scalar_lea.vmem %s2, 128
    %v752 = vld [vmem:[%s751] sm:$0xff]
    %v753 = vld [vmem:[%s751 + $0x8] sm:$0xff]
    %v754 = vld [vmem:[%s751 + $0x10] sm:$0xff]
    %v755 = vld [vmem:[%s751 + $0x18] sm:$0xff]
    %v756 = vld [vmem:[%s751 + $0x20] sm:$0xff]
    %v757 = vld [vmem:[%s751 + $0x28] sm:$0xff]
    %v758 = vld [vmem:[%s751 + $0x30] sm:$0xff]
    %v759 = vld [vmem:[%s751 + $0x38] sm:$0xff]
    %v760 = vpack.c.bf16 %v724, %v721
    %v761 = vpack.c.bf16 %v732, %v729
    %v762 = vpack.c.bf16 %v740, %v737
    %v763 = vpack.c.bf16 %v748, %v745
    %v764 = vpack.c.bf16 %v753, %v752
    %v765 = vpack.c.bf16 %v755, %v754
    %v766 = vpack.c.bf16 %v757, %v756
    %v767 = vpack.c.bf16 %v759, %v758
    %v769 = vsel %vm245, %v682, 0
    %v772 = vsel %vm245, %v683, 0
    %v775 = vsel %vm245, %v684, 0
    %v778 = vsel %vm245, %v685, 0
    %780 = vmatprep.subr.bf16.mxu0 0
    %781 = vmatpush1.bf16.msra.mxu0 %v766
    %782 = vmatprep.subr.bf16.mxu0 0
    %783 = vmatpush1.bf16.msra.mxu0 %v767
    %784 = vmatprep.subr.bf16.mxu0 0
    %785 = vmatpush1.bf16.msra.mxu0 0
    %786 = vmatprep.subr.bf16.mxu0 0
    %787 = vmatpush1.bf16.msra.mxu0 0
    %788 = vmatprep.subr.bf16.mxu0 0
    %789 = vmatpush1.bf16.msra.mxu0 0
    %790 = vmatprep.subr.bf16.mxu0 0
    %791 = vmatpush1.bf16.msra.mxu0 0
    %792 = vmatprep.subr.bf16.mxu0 0
    %793 = vmatpush1.bf16.msra.mxu0 0
    %794 = vmatprep.subr.bf16.mxu0 0
    %795 = vmatpush1.bf16.msra.mxu0 0
    %796 = vmatprep.subr.bf16.mxu0 0
    %797 = vmatpush1.bf16.msra.mxu0 0
    %798 = vmatprep.subr.bf16.mxu0 0
    %799 = vmatpush1.bf16.msra.mxu0 0
    %800 = vmatprep.subr.bf16.mxu0 0
    %801 = vmatpush1.bf16.msra.mxu0 0
    %802 = vmatprep.subr.bf16.mxu0 0
    %803 = vmatpush1.bf16.msra.mxu0 0
    %804 = vmatprep.subr.bf16.mxu0 0
    %805 = vmatpush1.bf16.msra.mxu0 0
    %806 = vmatprep.subr.bf16.mxu0 0
    %807 = vmatpush1.bf16.msra.mxu0 0
    %808 = vmatprep.subr.bf16.mxu0 0
    %809 = vmatpush1.bf16.msra.mxu0 0
    %810 = vmatprep.subr.bf16.mxu0 0
    %811 = vmatpush1.bf16.msra.mxu0 0
    %812 = vmatprep.mubr.bf16.mxu0 0
    %813 = vmatmul.mubr.bf16.gmra.mrb[0].mxu0 %v769
    %v814 = vpop.f32.mrb[0].mxu0
    %v815 = vadd.f32 0.0, %v814
    %v816 = vpop.f32.mrb[0].mxu0
    %v817 = vpop.f32.mrb[0].mxu0
    %v818 = vadd.f32 0.0, %v817
    %v819 = vpop.f32.mrb[0].mxu0
    %820 = vmatprep.mubr.bf16.mxu0 0
    %821 = vmatmul.mubr.bf16.gmra.mrb[0].mxu0 %v772
    %v822 = vpop.f32.mrb[0].mxu0
    %v823 = vadd.f32 0.0, %v822
    %v824 = vpop.f32.mrb[0].mxu0
    %v825 = vpop.f32.mrb[0].mxu0
    %v826 = vadd.f32 0.0, %v825
    %v827 = vpop.f32.mrb[0].mxu0
    %828 = vmatprep.mubr.bf16.mxu0 0
    %829 = vmatmul.mubr.bf16.gmra.mrb[0].mxu0 %v775
    %v830 = vpop.f32.mrb[0].mxu0
    %v831 = vadd.f32 0.0, %v830
    %v832 = vpop.f32.mrb[0].mxu0
    %v833 = vpop.f32.mrb[0].mxu0
    %v834 = vadd.f32 0.0, %v833
    %v835 = vpop.f32.mrb[0].mxu0
    %836 = vmatprep.mubr.bf16.mxu0 0
    %837 = vmatmul.mubr.bf16.gmra.mrb[0].mxu0 %v778
    %v838 = vpop.f32.mrb[0].mxu0
    %v839 = vadd.f32 0.0, %v838
    %v840 = vpop.f32.mrb[0].mxu0
    %v841 = vpop.f32.mrb[0].mxu0
    %v842 = vadd.f32 0.0, %v841
    %v843 = vpop.f32.mrb[0].mxu0
    %844 = vdwg.mxu0
    %v846 = vsel %vm245, %v760, 0
    %v849 = vsel %vm245, %v761, 0
    %v852 = vsel %vm245, %v762, 0
    %v855 = vsel %vm245, %v763, 0
    %857 = vmatprep.subr.bf16.mxu0 0
    %858 = vmatpush1.bf16.msra.mxu0 %v764
    %859 = vmatprep.subr.bf16.mxu0 0
    %860 = vmatpush1.bf16.msra.mxu0 %v765
    %861 = vmatprep.subr.bf16.mxu0 0
    %862 = vmatpush1.bf16.msra.mxu0 0
    %863 = vmatprep.subr.bf16.mxu0 0
    %864 = vmatpush1.bf16.msra.mxu0 0
    %865 = vmatprep.subr.bf16.mxu0 0
    %866 = vmatpush1.bf16.msra.mxu0 0
    %867 = vmatprep.subr.bf16.mxu0 0
    %868 = vmatpush1.bf16.msra.mxu0 0
    %869 = vmatprep.subr.bf16.mxu0 0
    %870 = vmatpush1.bf16.msra.mxu0 0
    %871 = vmatprep.subr.bf16.mxu0 0
    %872 = vmatpush1.bf16.msra.mxu0 0
    %873 = vmatprep.subr.bf16.mxu0 0
    %874 = vmatpush1.bf16.msra.mxu0 0
    %875 = vmatprep.subr.bf16.mxu0 0
    %876 = vmatpush1.bf16.msra.mxu0 0
    %877 = vmatprep.subr.bf16.mxu0 0
    %878 = vmatpush1.bf16.msra.mxu0 0
    %879 = vmatprep.subr.bf16.mxu0 0
    %880 = vmatpush1.bf16.msra.mxu0 0
    %881 = vmatprep.subr.bf16.mxu0 0
    %882 = vmatpush1.bf16.msra.mxu0 0
    %883 = vmatprep.subr.bf16.mxu0 0
    %884 = vmatpush1.bf16.msra.mxu0 0
    %885 = vmatprep.subr.bf16.mxu0 0
    %886 = vmatpush1.bf16.msra.mxu0 0
    %887 = vmatprep.subr.bf16.mxu0 0
    %888 = vmatpush1.bf16.msra.mxu0 0
    %889 = vmatprep.mubr.bf16.mxu0 0
    %890 = vmatmul.mubr.bf16.gmra.mrb[0].mxu0 %v846
    %v891 = vpop.f32.mrb[0].mxu0
    %v892 = vadd.f32 %v815, %v891
    %v893 = vpop.f32.mrb[0].mxu0
    %v894 = vpop.f32.mrb[0].mxu0
    %v895 = vadd.f32 %v818, %v894
    %v896 = vpop.f32.mrb[0].mxu0
    %897 = vmatprep.mubr.bf16.mxu0 0
    %898 = vmatmul.mubr.bf16.gmra.mrb[0].mxu0 %v849
    %v899 = vpop.f32.mrb[0].mxu0
    %v900 = vadd.f32 %v823, %v899
    %v901 = vpop.f32.mrb[0].mxu0
    %v902 = vpop.f32.mrb[0].mxu0
    %v903 = vadd.f32 %v826, %v902
    %v904 = vpop.f32.mrb[0].mxu0
    %905 = vmatprep.mubr.bf16.mxu0 0
    %906 = vmatmul.mubr.bf16.gmra.mrb[0].mxu0 %v852
    %v907 = vpop.f32.mrb[0].mxu0
    %v908 = vadd.f32 %v831, %v907
    %v909 = vpop.f32.mrb[0].mxu0
    %v910 = vpop.f32.mrb[0].mxu0
    %v911 = vadd.f32 %v834, %v910
    %v912 = vpop.f32.mrb[0].mxu0
    %913 = vmatprep.mubr.bf16.mxu0 0
    %914 = vmatmul.mubr.bf16.gmra.mrb[0].mxu0 %v855
    %v915 = vpop.f32.mrb[0].mxu0
    %v916 = vadd.f32 %v839, %v915
    %v917 = vpop.f32.mrb[0].mxu0
    %v918 = vpop.f32.mrb[0].mxu0
    %v919 = vadd.f32 %v842, %v918
    %v920 = vpop.f32.mrb[0].mxu0
    %921 = vdwg.mxu0
    %v922 = vld [vmem:[%s3 + $0x2] sm:$0x1]
    %v923 = vlaneseq
    %v924 = vshrl.u32 %v923, 7
    %v925 = vsub.s32 0, %v924
    %v926 = vrot.slane %v922, %v925
    %v927 = vadd.f32 %v892, %v926
    %v928 = vadd.f32 %v895, %v926
    %v929 = vadd.f32 %v900, %v926
    %v930 = vadd.f32 %v903, %v926
    %v931 = vadd.f32 %v908, %v926
    %v932 = vadd.f32 %v911, %v926
    %v933 = vadd.f32 %v916, %v926
    %v934 = vadd.f32 %v919, %v926
    %v935 = vmax.f32 %v927, 0.0
    %v936 = vmax.f32 %v928, 0.0
    %v937 = vmax.f32 %v929, 0.0
    %v938 = vmax.f32 %v930, 0.0
    %v939 = vmax.f32 %v931, 0.0
    %v940 = vmax.f32 %v932, 0.0
    %v941 = vmax.f32 %v933, 0.0
    %v942 = vmax.f32 %v934, 0.0
    %v943 = vpack.c.bf16 %v936, %v935
    %v944 = vpack.c.bf16 %v938, %v937
    %v945 = vpack.c.bf16 %v940, %v939
    %v946 = vpack.c.bf16 %v942, %v941
    %947 = vmatprep.subr.bf16.mxu0 0
    %948 = vmatpush1.bf16.msra.mxu0 %v943
    %949 = vmatprep.subr.bf16.mxu0 0
    %950 = vmatpush1.bf16.msra.mxu0 %v944
    %951 = vmatprep.subr.bf16.mxu0 0
    %952 = vmatpush1.bf16.msra.mxu0 %v945
    %953 = vmatprep.subr.bf16.mxu0 0
    %954 = vmatpush1.bf16.msra.mxu0 %v946
    %955 = vmatprep.subr.bf16.mxu0 0
    %956 = vmatpush1.bf16.msra.mxu0 0
    %957 = vmatprep.subr.bf16.mxu0 0
    %958 = vmatpush1.bf16.msra.mxu0 0
    %959 = vmatprep.subr.bf16.mxu0 0
    %960 = vmatpush1.bf16.msra.mxu0 0
    %961 = vmatprep.subr.bf16.mxu0 0
    %962 = vmatpush1.bf16.msra.mxu0 0
    %963 = vmatprep.subr.bf16.mxu0 0
    %964 = vmatpush1.bf16.msra.mxu0 0
    %965 = vmatprep.subr.bf16.mxu0 0
    %966 = vmatpush1.bf16.msra.mxu0 0
    %967 = vmatprep.subr.bf16.mxu0 0
    %968 = vmatpush1.bf16.msra.mxu0 0
    %969 = vmatprep.subr.bf16.mxu0 0
    %970 = vmatpush1.bf16.msra.mxu0 0
    %971 = vmatprep.subr.bf16.mxu0 0
    %972 = vmatpush1.bf16.msra.mxu0 0
    %973 = vmatprep.subr.bf16.mxu0 0
    %974 = vmatpush1.bf16.msra.mxu0 0
    %975 = vmatprep.subr.bf16.mxu0 0
    %976 = vmatpush1.bf16.msra.mxu0 0
    %977 = vmatprep.subr.bf16.mxu0 0
    %978 = vmatpush1.bf16.msra.mxu0 0
    %979 = vmatprep.mubr.bf16.mxu0 0
    %980 = vmatmul.mubr.bf16.gmra.mrb[0].mxu0 %v153
    %v981 = vpop.f32.mrb[0].mxu0
    %v982 = vadd.f32 0.0, %v981
    %v983 = vpop.f32.mrb[0].mxu0
    %v984 = vpop.f32.mrb[0].mxu0
    %v985 = vadd.f32 0.0, %v984
    %v986 = vpop.f32.mrb[0].mxu0
    %987 = vmatprep.mubr.bf16.mxu0 0
    %988 = vmatmul.mubr.bf16.gmra.mrb[0].mxu0 %v156
    %v989 = vpop.f32.mrb[0].mxu0
    %v990 = vadd.f32 0.0, %v989
    %v991 = vpop.f32.mrb[0].mxu0
    %v992 = vpop.f32.mrb[0].mxu0
    %v993 = vadd.f32 0.0, %v992
    %v994 = vpop.f32.mrb[0].mxu0
    %995 = vmatprep.mubr.bf16.mxu0 0
    %996 = vmatmul.mubr.bf16.gmra.mrb[0].mxu0 %v159
    %v997 = vpop.f32.mrb[0].mxu0
    %v998 = vadd.f32 0.0, %v997
    %v999 = vpop.f32.mrb[0].mxu0
    %v1000 = vpop.f32.mrb[0].mxu0
    %v1001 = vadd.f32 0.0, %v1000
    %v1002 = vpop.f32.mrb[0].mxu0
    %1003 = vmatprep.mubr.bf16.mxu0 0
    %1004 = vmatmul.mubr.bf16.gmra.mrb[0].mxu0 %v162
    %v1005 = vpop.f32.mrb[0].mxu0
    %v1006 = vadd.f32 0.0, %v1005
    %v1007 = vpop.f32.mrb[0].mxu0
    %v1008 = vpop.f32.mrb[0].mxu0
    %v1009 = vadd.f32 0.0, %v1008
    %v1010 = vpop.f32.mrb[0].mxu0
    %1011 = vdwg.mxu0
    %s1012 = scalar_lea.vmem %s2, 192
    %v1013 = vld [vmem:[%s1012] sm:$0xff]
    %v1014 = vld [vmem:[%s1012 + $0x8] sm:$0xff]
    %v1015 = vld [vmem:[%s1012 + $0x10] sm:$0xff]
    %v1016 = vld [vmem:[%s1012 + $0x18] sm:$0xff]
    %v1017 = vld [vmem:[%s1012 + $0x20] sm:$0xff]
    %v1018 = vld [vmem:[%s1012 + $0x28] sm:$0xff]
    %v1019 = vld [vmem:[%s1012 + $0x30] sm:$0xff]
    %v1020 = vld [vmem:[%s1012 + $0x38] sm:$0xff]
    %v1021 = vpack.c.bf16 %v985, %v982
    %v1022 = vpack.c.bf16 %v993, %v990
    %v1023 = vpack.c.bf16 %v1001, %v998
    %v1024 = vpack.c.bf16 %v1009, %v1006
    %v1025 = vpack.c.bf16 %v1014, %v1013
    %v1026 = vpack.c.bf16 %v1016, %v1015
    %v1027 = vpack.c.bf16 %v1018, %v1017
    %v1028 = vpack.c.bf16 %v1020, %v1019
    %v1030 = vsel %vm245, %v943, 0
    %v1033 = vsel %vm245, %v944, 0
    %v1036 = vsel %vm245, %v945, 0
    %v1039 = vsel %vm245, %v946, 0
    %1041 = vmatprep.subr.bf16.mxu0 0
    %1042 = vmatpush1.bf16.msra.mxu0 %v1027
    %1043 = vmatprep.subr.bf16.mxu0 0
    %1044 = vmatpush1.bf16.msra.mxu0 %v1028
    %1045 = vmatprep.subr.bf16.mxu0 0
    %1046 = vmatpush1.bf16.msra.mxu0 0
    %1047 = vmatprep.subr.bf16.mxu0 0
    %1048 = vmatpush1.bf16.msra.mxu0 0
    %1049 = vmatprep.subr.bf16.mxu0 0
    %1050 = vmatpush1.bf16.msra.mxu0 0
    %1051 = vmatprep.subr.bf16.mxu0 0
    %1052 = vmatpush1.bf16.msra.mxu0 0
    %1053 = vmatprep.subr.bf16.mxu0 0
    %1054 = vmatpush1.bf16.msra.mxu0 0
    %1055 = vmatprep.subr.bf16.mxu0 0
    %1056 = vmatpush1.bf16.msra.mxu0 0
    %1057 = vmatprep.subr.bf16.mxu0 0
    %1058 = vmatpush1.bf16.msra.mxu0 0
    %1059 = vmatprep.subr.bf16.mxu0 0
    %1060 = vmatpush1.bf16.msra.mxu0 0
    %1061 = vmatprep.subr.bf16.mxu0 0
    %1062 = vmatpush1.bf16.msra.mxu0 0
    %1063 = vmatprep.subr.bf16.mxu0 0
    %1064 = vmatpush1.bf16.msra.mxu0 0
    %1065 = vmatprep.subr.bf16.mxu0 0
    %1066 = vmatpush1.bf16.msra.mxu0 0
    %1067 = vmatprep.subr.bf16.mxu0 0
    %1068 = vmatpush1.bf16.msra.mxu0 0
    %1069 = vmatprep.subr.bf16.mxu0 0
    %1070 = vmatpush1.bf16.msra.mxu0 0
    %1071 = vmatprep.subr.bf16.mxu0 0
    %1072 = vmatpush1.bf16.msra.mxu0 0
    %1073 = vmatprep.mubr.bf16.mxu0 0
    %1074 = vmatmul.mubr.bf16.gmra.mrb[0].mxu0 %v1030
    %v1075 = vpop.f32.mrb[0].mxu0
    %v1076 = vadd.f32 0.0, %v1075
    %v1077 = vpop.f32.mrb[0].mxu0
    %v1078 = vpop.f32.mrb[0].mxu0
    %v1079 = vadd.f32 0.0, %v1078
    %v1080 = vpop.f32.mrb[0].mxu0
    %1081 = vmatprep.mubr.bf16.mxu0 0
    %1082 = vmatmul.mubr.bf16.gmra.mrb[0].mxu0 %v1033
    %v1083 = vpop.f32.mrb[0].mxu0
    %v1084 = vadd.f32 0.0, %v1083
    %v1085 = vpop.f32.mrb[0].mxu0
    %v1086 = vpop.f32.mrb[0].mxu0
    %v1087 = vadd.f32 0.0, %v1086
    %v1088 = vpop.f32.mrb[0].mxu0
    %1089 = vmatprep.mubr.bf16.mxu0 0
    %1090 = vmatmul.mubr.bf16.gmra.mrb[0].mxu0 %v1036
    %v1091 = vpop.f32.mrb[0].mxu0
    %v1092 = vadd.f32 0.0, %v1091
    %v1093 = vpop.f32.mrb[0].mxu0
    %v1094 = vpop.f32.mrb[0].mxu0
    %v1095 = vadd.f32 0.0, %v1094
    %v1096 = vpop.f32.mrb[0].mxu0
    %1097 = vmatprep.mubr.bf16.mxu0 0
    %1098 = vmatmul.mubr.bf16.gmra.mrb[0].mxu0 %v1039
    %v1099 = vpop.f32.mrb[0].mxu0
    %v1100 = vadd.f32 0.0, %v1099
    %v1101 = vpop.f32.mrb[0].mxu0
    %v1102 = vpop.f32.mrb[0].mxu0
    %v1103 = vadd.f32 0.0, %v1102
    %v1104 = vpop.f32.mrb[0].mxu0
    %1105 = vdwg.mxu0
    %v1107 = vsel %vm245, %v1021, 0
    %v1110 = vsel %vm245, %v1022, 0
    %v1113 = vsel %vm245, %v1023, 0
    %v1116 = vsel %vm245, %v1024, 0
    %1118 = vmatprep.subr.bf16.mxu0 0
    %1119 = vmatpush1.bf16.msra.mxu0 %v1025
    %1120 = vmatprep.subr.bf16.mxu0 0
    %1121 = vmatpush1.bf16.msra.mxu0 %v1026
    %1122 = vmatprep.subr.bf16.mxu0 0
    %1123 = vmatpush1.bf16.msra.mxu0 0
    %1124 = vmatprep.subr.bf16.mxu0 0
    %1125 = vmatpush1.bf16.msra.mxu0 0
    %1126 = vmatprep.subr.bf16.mxu0 0
    %1127 = vmatpush1.bf16.msra.mxu0 0
    %1128 = vmatprep.subr.bf16.mxu0 0
    %1129 = vmatpush1.bf16.msra.mxu0 0
    %1130 = vmatprep.subr.bf16.mxu0 0
    %1131 = vmatpush1.bf16.msra.mxu0 0
    %1132 = vmatprep.subr.bf16.mxu0 0
    %1133 = vmatpush1.bf16.msra.mxu0 0
    %1134 = vmatprep.subr.bf16.mxu0 0
    %1135 = vmatpush1.bf16.msra.mxu0 0
    %1136 = vmatprep.subr.bf16.mxu0 0
    %1137 = vmatpush1.bf16.msra.mxu0 0
    %1138 = vmatprep.subr.bf16.mxu0 0
    %1139 = vmatpush1.bf16.msra.mxu0 0
    %1140 = vmatprep.subr.bf16.mxu0 0
    %1141 = vmatpush1.bf16.msra.mxu0 0
    %1142 = vmatprep.subr.bf16.mxu0 0
    %1143 = vmatpush1.bf16.msra.mxu0 0
    %1144 = vmatprep.subr.bf16.mxu0 0
    %1145 = vmatpush1.bf16.msra.mxu0 0
    %1146 = vmatprep.subr.bf16.mxu0 0
    %1147 = vmatpush1.bf16.msra.mxu0 0
    %1148 = vmatprep.subr.bf16.mxu0 0
    %1149 = vmatpush1.bf16.msra.mxu0 0
    %1150 = vmatprep.mubr.bf16.mxu0 0
    %1151 = vmatmul.mubr.bf16.gmra.mrb[0].mxu0 %v1107
    %v1152 = vpop.f32.mrb[0].mxu0
    %v1153 = vadd.f32 %v1076, %v1152
    %v1154 = vpop.f32.mrb[0].mxu0
    %v1155 = vpop.f32.mrb[0].mxu0
    %v1156 = vadd.f32 %v1079, %v1155
    %v1157 = vpop.f32.mrb[0].mxu0
    %1158 = vmatprep.mubr.bf16.mxu0 0
    %1159 = vmatmul.mubr.bf16.gmra.mrb[0].mxu0 %v1110
    %v1160 = vpop.f32.mrb[0].mxu0
    %v1161 = vadd.f32 %v1084, %v1160
    %v1162 = vpop.f32.mrb[0].mxu0
    %v1163 = vpop.f32.mrb[0].mxu0
    %v1164 = vadd.f32 %v1087, %v1163
    %v1165 = vpop.f32.mrb[0].mxu0
    %1166 = vmatprep.mubr.bf16.mxu0 0
    %1167 = vmatmul.mubr.bf16.gmra.mrb[0].mxu0 %v1113
    %v1168 = vpop.f32.mrb[0].mxu0
    %v1169 = vadd.f32 %v1092, %v1168
    %v1170 = vpop.f32.mrb[0].mxu0
    %v1171 = vpop.f32.mrb[0].mxu0
    %v1172 = vadd.f32 %v1095, %v1171
    %v1173 = vpop.f32.mrb[0].mxu0
    %1174 = vmatprep.mubr.bf16.mxu0 0
    %1175 = vmatmul.mubr.bf16.gmra.mrb[0].mxu0 %v1116
    %v1176 = vpop.f32.mrb[0].mxu0
    %v1177 = vadd.f32 %v1100, %v1176
    %v1178 = vpop.f32.mrb[0].mxu0
    %v1179 = vpop.f32.mrb[0].mxu0
    %v1180 = vadd.f32 %v1103, %v1179
    %v1181 = vpop.f32.mrb[0].mxu0
    %1182 = vdwg.mxu0
    %v1183 = vld [vmem:[%s3 + $0x3] sm:$0x1]
    %v1184 = vlaneseq
    %v1185 = vshrl.u32 %v1184, 7
    %v1186 = vsub.s32 0, %v1185
    %v1187 = vrot.slane %v1183, %v1186
    %v1188 = vadd.f32 %v1153, %v1187
    %v1189 = vadd.f32 %v1156, %v1187
    %v1190 = vadd.f32 %v1161, %v1187
    %v1191 = vadd.f32 %v1164, %v1187
    %v1192 = vadd.f32 %v1169, %v1187
    %v1193 = vadd.f32 %v1172, %v1187
    %v1194 = vadd.f32 %v1177, %v1187
    %v1195 = vadd.f32 %v1180, %v1187
    %v1196 = vmax.f32 %v1188, 0.0
    %v1197 = vmax.f32 %v1189, 0.0
    %v1198 = vmax.f32 %v1190, 0.0
    %v1199 = vmax.f32 %v1191, 0.0
    %v1200 = vmax.f32 %v1192, 0.0
    %v1201 = vmax.f32 %v1193, 0.0
    %v1202 = vmax.f32 %v1194, 0.0
    %v1203 = vmax.f32 %v1195, 0.0
    %v1204 = vpack.c.bf16 %v1197, %v1196
    %v1205 = vpack.c.bf16 %v1199, %v1198
    %v1206 = vpack.c.bf16 %v1201, %v1200
    %v1207 = vpack.c.bf16 %v1203, %v1202
    %1208 = vmatprep.subr.bf16.mxu0 0
    %1209 = vmatpush1.bf16.msra.mxu0 %v1204
    %1210 = vmatprep.subr.bf16.mxu0 0
    %1211 = vmatpush1.bf16.msra.mxu0 %v1205
    %1212 = vmatprep.subr.bf16.mxu0 0
    %1213 = vmatpush1.bf16.msra.mxu0 %v1206
    %1214 = vmatprep.subr.bf16.mxu0 0
    %1215 = vmatpush1.bf16.msra.mxu0 %v1207
    %1216 = vmatprep.subr.bf16.mxu0 0
    %1217 = vmatpush1.bf16.msra.mxu0 0
    %1218 = vmatprep.subr.bf16.mxu0 0
    %1219 = vmatpush1.bf16.msra.mxu0 0
    %1220 = vmatprep.subr.bf16.mxu0 0
    %1221 = vmatpush1.bf16.msra.mxu0 0
    %1222 = vmatprep.subr.bf16.mxu0 0
    %1223 = vmatpush1.bf16.msra.mxu0 0
    %1224 = vmatprep.subr.bf16.mxu0 0
    %1225 = vmatpush1.bf16.msra.mxu0 0
    %1226 = vmatprep.subr.bf16.mxu0 0
    %1227 = vmatpush1.bf16.msra.mxu0 0
    %1228 = vmatprep.subr.bf16.mxu0 0
    %1229 = vmatpush1.bf16.msra.mxu0 0
    %1230 = vmatprep.subr.bf16.mxu0 0
    %1231 = vmatpush1.bf16.msra.mxu0 0
    %1232 = vmatprep.subr.bf16.mxu0 0
    %1233 = vmatpush1.bf16.msra.mxu0 0
    %1234 = vmatprep.subr.bf16.mxu0 0
    %1235 = vmatpush1.bf16.msra.mxu0 0
    %1236 = vmatprep.subr.bf16.mxu0 0
    %1237 = vmatpush1.bf16.msra.mxu0 0
    %1238 = vmatprep.subr.bf16.mxu0 0
    %1239 = vmatpush1.bf16.msra.mxu0 0
    %1240 = vmatprep.mubr.bf16.mxu0 0
    %1241 = vmatmul.mubr.bf16.gmra.mrb[0].mxu0 %v153
    %v1242 = vpop.f32.mrb[0].mxu0
    %v1243 = vadd.f32 0.0, %v1242
    %v1244 = vpop.f32.mrb[0].mxu0
    %v1245 = vpop.f32.mrb[0].mxu0
    %v1246 = vadd.f32 0.0, %v1245
    %v1247 = vpop.f32.mrb[0].mxu0
    %1248 = vmatprep.mubr.bf16.mxu0 0
    %1249 = vmatmul.mubr.bf16.gmra.mrb[0].mxu0 %v156
    %v1250 = vpop.f32.mrb[0].mxu0
    %v1251 = vadd.f32 0.0, %v1250
    %v1252 = vpop.f32.mrb[0].mxu0
    %v1253 = vpop.f32.mrb[0].mxu0
    %v1254 = vadd.f32 0.0, %v1253
    %v1255 = vpop.f32.mrb[0].mxu0
    %1256 = vmatprep.mubr.bf16.mxu0 0
    %1257 = vmatmul.mubr.bf16.gmra.mrb[0].mxu0 %v159
    %v1258 = vpop.f32.mrb[0].mxu0
    %v1259 = vadd.f32 0.0, %v1258
    %v1260 = vpop.f32.mrb[0].mxu0
    %v1261 = vpop.f32.mrb[0].mxu0
    %v1262 = vadd.f32 0.0, %v1261
    %v1263 = vpop.f32.mrb[0].mxu0
    %1264 = vmatprep.mubr.bf16.mxu0 0
    %1265 = vmatmul.mubr.bf16.gmra.mrb[0].mxu0 %v162
    %v1266 = vpop.f32.mrb[0].mxu0
    %v1267 = vadd.f32 0.0, %v1266
    %v1268 = vpop.f32.mrb[0].mxu0
    %v1269 = vpop.f32.mrb[0].mxu0
    %v1270 = vadd.f32 0.0, %v1269
    %v1271 = vpop.f32.mrb[0].mxu0
    %1272 = vdwg.mxu0
    %s1273 = scalar_lea.vmem %s2, 256
    %v1274 = vld [vmem:[%s1273] sm:$0xff]
    %v1275 = vld [vmem:[%s1273 + $0x8] sm:$0xff]
    %v1276 = vld [vmem:[%s1273 + $0x10] sm:$0xff]
    %v1277 = vld [vmem:[%s1273 + $0x18] sm:$0xff]
    %v1278 = vld [vmem:[%s1273 + $0x20] sm:$0xff]
    %v1279 = vld [vmem:[%s1273 + $0x28] sm:$0xff]
    %v1280 = vld [vmem:[%s1273 + $0x30] sm:$0xff]
    %v1281 = vld [vmem:[%s1273 + $0x38] sm:$0xff]
    %v1282 = vpack.c.bf16 %v1246, %v1243
    %v1283 = vpack.c.bf16 %v1254, %v1251
    %v1284 = vpack.c.bf16 %v1262, %v1259
    %v1285 = vpack.c.bf16 %v1270, %v1267
    %v1286 = vpack.c.bf16 %v1275, %v1274
    %v1287 = vpack.c.bf16 %v1277, %v1276
    %v1288 = vpack.c.bf16 %v1279, %v1278
    %v1289 = vpack.c.bf16 %v1281, %v1280
    %v1291 = vsel %vm245, %v1204, 0
    %v1294 = vsel %vm245, %v1205, 0
    %v1297 = vsel %vm245, %v1206, 0
    %v1300 = vsel %vm245, %v1207, 0
    %1302 = vmatprep.subr.bf16.mxu0 0
    %1303 = vmatpush1.bf16.msra.mxu0 %v1288
    %1304 = vmatprep.subr.bf16.mxu0 0
    %1305 = vmatpush1.bf16.msra.mxu0 %v1289
    %1306 = vmatprep.subr.bf16.mxu0 0
    %1307 = vmatpush1.bf16.msra.mxu0 0
    %1308 = vmatprep.subr.bf16.mxu0 0
    %1309 = vmatpush1.bf16.msra.mxu0 0
    %1310 = vmatprep.subr.bf16.mxu0 0
    %1311 = vmatpush1.bf16.msra.mxu0 0
    %1312 = vmatprep.subr.bf16.mxu0 0
    %1313 = vmatpush1.bf16.msra.mxu0 0
    %1314 = vmatprep.subr.bf16.mxu0 0
    %1315 = vmatpush1.bf16.msra.mxu0 0
    %1316 = vmatprep.subr.bf16.mxu0 0
    %1317 = vmatpush1.bf16.msra.mxu0 0
    %1318 = vmatprep.subr.bf16.mxu0 0
    %1319 = vmatpush1.bf16.msra.mxu0 0
    %1320 = vmatprep.subr.bf16.mxu0 0
    %1321 = vmatpush1.bf16.msra.mxu0 0
    %1322 = vmatprep.subr.bf16.mxu0 0
    %1323 = vmatpush1.bf16.msra.mxu0 0
    %1324 = vmatprep.subr.bf16.mxu0 0
    %1325 = vmatpush1.bf16.msra.mxu0 0
    %1326 = vmatprep.subr.bf16.mxu0 0
    %1327 = vmatpush1.bf16.msra.mxu0 0
    %1328 = vmatprep.subr.bf16.mxu0 0
    %1329 = vmatpush1.bf16.msra.mxu0 0
    %1330 = vmatprep.subr.bf16.mxu0 0
    %1331 = vmatpush1.bf16.msra.mxu0 0
    %1332 = vmatprep.subr.bf16.mxu0 0
    %1333 = vmatpush1.bf16.msra.mxu0 0
    %1334 = vmatprep.mubr.bf16.mxu0 0
    %1335 = vmatmul.mubr.bf16.gmra.mrb[0].mxu0 %v1291
    %v1336 = vpop.f32.mrb[0].mxu0
    %v1337 = vadd.f32 0.0, %v1336
    %v1338 = vpop.f32.mrb[0].mxu0
    %v1339 = vpop.f32.mrb[0].mxu0
    %v1340 = vadd.f32 0.0, %v1339
    %v1341 = vpop.f32.mrb[0].mxu0
    %1342 = vmatprep.mubr.bf16.mxu0 0
    %1343 = vmatmul.mubr.bf16.gmra.mrb[0].mxu0 %v1294
    %v1344 = vpop.f32.mrb[0].mxu0
    %v1345 = vadd.f32 0.0, %v1344
    %v1346 = vpop.f32.mrb[0].mxu0
    %v1347 = vpop.f32.mrb[0].mxu0
    %v1348 = vadd.f32 0.0, %v1347
    %v1349 = vpop.f32.mrb[0].mxu0
    %1350 = vmatprep.mubr.bf16.mxu0 0
    %1351 = vmatmul.mubr.bf16.gmra.mrb[0].mxu0 %v1297
    %v1352 = vpop.f32.mrb[0].mxu0
    %v1353 = vadd.f32 0.0, %v1352
    %v1354 = vpop.f32.mrb[0].mxu0
    %v1355 = vpop.f32.mrb[0].mxu0
    %v1356 = vadd.f32 0.0, %v1355
    %v1357 = vpop.f32.mrb[0].mxu0
    %1358 = vmatprep.mubr.bf16.mxu0 0
    %1359 = vmatmul.mubr.bf16.gmra.mrb[0].mxu0 %v1300
    %v1360 = vpop.f32.mrb[0].mxu0
    %v1361 = vadd.f32 0.0, %v1360
    %v1362 = vpop.f32.mrb[0].mxu0
    %v1363 = vpop.f32.mrb[0].mxu0
    %v1364 = vadd.f32 0.0, %v1363
    %v1365 = vpop.f32.mrb[0].mxu0
    %1366 = vdwg.mxu0
    %v1368 = vsel %vm245, %v1282, 0
    %v1371 = vsel %vm245, %v1283, 0
    %v1374 = vsel %vm245, %v1284, 0
    %v1377 = vsel %vm245, %v1285, 0
    %1379 = vmatprep.subr.bf16.mxu0 0
    %1380 = vmatpush1.bf16.msra.mxu0 %v1286
    %1381 = vmatprep.subr.bf16.mxu0 0
    %1382 = vmatpush1.bf16.msra.mxu0 %v1287
    %1383 = vmatprep.subr.bf16.mxu0 0
    %1384 = vmatpush1.bf16.msra.mxu0 0
    %1385 = vmatprep.subr.bf16.mxu0 0
    %1386 = vmatpush1.bf16.msra.mxu0 0
    %1387 = vmatprep.subr.bf16.mxu0 0
    %1388 = vmatpush1.bf16.msra.mxu0 0
    %1389 = vmatprep.subr.bf16.mxu0 0
    %1390 = vmatpush1.bf16.msra.mxu0 0
    %1391 = vmatprep.subr.bf16.mxu0 0
    %1392 = vmatpush1.bf16.msra.mxu0 0
    %1393 = vmatprep.subr.bf16.mxu0 0
    %1394 = vmatpush1.bf16.msra.mxu0 0
    %1395 = vmatprep.subr.bf16.mxu0 0
    %1396 = vmatpush1.bf16.msra.mxu0 0
    %1397 = vmatprep.subr.bf16.mxu0 0
    %1398 = vmatpush1.bf16.msra.mxu0 0
    %1399 = vmatprep.subr.bf16.mxu0 0
    %1400 = vmatpush1.bf16.msra.mxu0 0
    %1401 = vmatprep.subr.bf16.mxu0 0
    %1402 = vmatpush1.bf16.msra.mxu0 0
    %1403 = vmatprep.subr.bf16.mxu0 0
    %1404 = vmatpush1.bf16.msra.mxu0 0
    %1405 = vmatprep.subr.bf16.mxu0 0
    %1406 = vmatpush1.bf16.msra.mxu0 0
    %1407 = vmatprep.subr.bf16.mxu0 0
    %1408 = vmatpush1.bf16.msra.mxu0 0
    %1409 = vmatprep.subr.bf16.mxu0 0
    %1410 = vmatpush1.bf16.msra.mxu0 0
    %1411 = vmatprep.mubr.bf16.mxu0 0
    %1412 = vmatmul.mubr.bf16.gmra.mrb[0].mxu0 %v1368
    %v1413 = vpop.f32.mrb[0].mxu0
    %v1414 = vadd.f32 %v1337, %v1413
    %v1415 = vpop.f32.mrb[0].mxu0
    %v1416 = vpop.f32.mrb[0].mxu0
    %v1417 = vadd.f32 %v1340, %v1416
    %v1418 = vpop.f32.mrb[0].mxu0
    %1419 = vmatprep.mubr.bf16.mxu0 0
    %1420 = vmatmul.mubr.bf16.gmra.mrb[0].mxu0 %v1371
    %v1421 = vpop.f32.mrb[0].mxu0
    %v1422 = vadd.f32 %v1345, %v1421
    %v1423 = vpop.f32.mrb[0].mxu0
    %v1424 = vpop.f32.mrb[0].mxu0
    %v1425 = vadd.f32 %v1348, %v1424
    %v1426 = vpop.f32.mrb[0].mxu0
    %1427 = vmatprep.mubr.bf16.mxu0 0
    %1428 = vmatmul.mubr.bf16.gmra.mrb[0].mxu0 %v1374
    %v1429 = vpop.f32.mrb[0].mxu0
    %v1430 = vadd.f32 %v1353, %v1429
    %v1431 = vpop.f32.mrb[0].mxu0
    %v1432 = vpop.f32.mrb[0].mxu0
    %v1433 = vadd.f32 %v1356, %v1432
    %v1434 = vpop.f32.mrb[0].mxu0
    %1435 = vmatprep.mubr.bf16.mxu0 0
    %1436 = vmatmul.mubr.bf16.gmra.mrb[0].mxu0 %v1377
    %v1437 = vpop.f32.mrb[0].mxu0
    %v1438 = vadd.f32 %v1361, %v1437
    %v1439 = vpop.f32.mrb[0].mxu0
    %v1440 = vpop.f32.mrb[0].mxu0
    %v1441 = vadd.f32 %v1364, %v1440
    %v1442 = vpop.f32.mrb[0].mxu0
    %1443 = vdwg.mxu0
    %v1444 = vld [vmem:[%s3 + $0x4] sm:$0x1]
    %v1445 = vlaneseq
    %v1446 = vshrl.u32 %v1445, 7
    %v1447 = vsub.s32 0, %v1446
    %v1448 = vrot.slane %v1444, %v1447
    %v1449 = vadd.f32 %v1414, %v1448
    %v1450 = vadd.f32 %v1417, %v1448
    %v1451 = vadd.f32 %v1422, %v1448
    %v1452 = vadd.f32 %v1425, %v1448
    %v1453 = vadd.f32 %v1430, %v1448
    %v1454 = vadd.f32 %v1433, %v1448
    %v1455 = vadd.f32 %v1438, %v1448
    %v1456 = vadd.f32 %v1441, %v1448
    %v1457 = vsel %vm245, %v1449, 0.0
    %v1458 = vsel %vm245, %v1450, 0.0
    %v1459 = vadd.f32 %v1457, %v1458
    %v1460 = vrot.slane %v1459, 4
    %v1461 = vadd.f32 %v1459, %v1460
    %v1462 = vrot.slane %v1461, 2
    %v1463 = vadd.f32 %v1461, %v1462
    %v1464 = vrot.slane %v1463, 1
    %v1465 = vadd.f32 %v1463, %v1464
    %v1466 = vsel %vm245, %v1451, 0.0
    %v1467 = vsel %vm245, %v1452, 0.0
    %v1468 = vadd.f32 %v1466, %v1467
    %v1469 = vrot.slane %v1468, 4
    %v1470 = vadd.f32 %v1468, %v1469
    %v1471 = vrot.slane %v1470, 2
    %v1472 = vadd.f32 %v1470, %v1471
    %v1473 = vrot.slane %v1472, 1
    %v1474 = vadd.f32 %v1472, %v1473
    %v1475 = vsel %vm245, %v1453, 0.0
    %v1476 = vsel %vm245, %v1454, 0.0
    %v1477 = vadd.f32 %v1475, %v1476
    %v1478 = vrot.slane %v1477, 4
    %v1479 = vadd.f32 %v1477, %v1478
    %v1480 = vrot.slane %v1479, 2
    %v1481 = vadd.f32 %v1479, %v1480
    %v1482 = vrot.slane %v1481, 1
    %v1483 = vadd.f32 %v1481, %v1482
    %v1484 = vsel %vm245, %v1455, 0.0
    %v1485 = vsel %vm245, %v1456, 0.0
    %v1486 = vadd.f32 %v1484, %v1485
    %v1487 = vrot.slane %v1486, 4
    %v1488 = vadd.f32 %v1486, %v1487
    %v1489 = vrot.slane %v1488, 2
    %v1490 = vadd.f32 %v1488, %v1489
    %v1491 = vrot.slane %v1490, 1
    %v1492 = vadd.f32 %v1490, %v1491
    %vm1497 = vcmask 1041409
    %v1498 = vsel %vm1497, %v1474, %v1465
    %vm1499 = vcmask 1042434
    %v1500 = vsel %vm1499, %v1483, %v1498
    %vm1501 = vcmask 1043459
    %v1502 = vsel %vm1501, %v1492, %v1500
    %vm1504 = vcmask 257024
    %1505 = vst.msk [vmem:[#allocation3] sm:$0xf] %vm1504, %v1502
    // Predicated region
    $region18: #{tpu_custom_call.1} parent=1 // pred_check
      _
    $region19: #{tpu_custom_call.1} parent=1 // pred_check_branch
      %1507 = sbr.rel (0) target = $region21
    $region20: #{tpu_custom_call.1} parent=1 // pred_region
      %s1509 = ssub.s32 64, 64
      %1510 = vsyncadd [#allocation4], %s1509
      %s1512 = sshll.u32 [#allocation3], 4
      %s1513 = int_to_ptr.vmem [resolvable:$true] %s1512
      %1515 = dma.vmem_to_hbm [thread:$0]  %s1513, 64, %s4, [#allocation4]
    $region21: #{tpu_custom_call.1} parent=1 // pred_fallthru
      _
    // Predicated region
    $region22: #{tpu_custom_call.1} parent=1 // pred_check
      _
    $region23: #{tpu_custom_call.1} parent=1 // pred_check_branch
      %1517 = sbr.rel (0) target = $region25
    $region24: #{tpu_custom_call.1} parent=1 // pred_region
      %1518 = dma.done [#allocation4], 64
    $region25: #{tpu_custom_call.1} parent=1 // pred_fallthru
      _
    %1519 = vsyncpa [#allocation4], 1

</llo_original>
